<compile_context>
chip_gen: v7x
topology: tpu7x:2x2x1
jax: 0.10.0
libtpu: 0.0.40
codegen_flags: <defaults>
</compile_context>

<pallas_src>
import functools
import math

import jax
import jax.numpy as jnp
import numpy as np
from jax.experimental import pallas as pl
from jax.experimental.pallas import tpu as pltpu


# ----------------------------- fused Pallas kernel -----------------------------

def _fused_sparse_mha_kernel(q_ref, k_ref, v_ref,
                             wqt_ref, wkt_ref, wvt_ref, wot_ref,
                             gth_ref, kbias_ref, vbias_ref, madd_ref,
                             hsum_ref, hbcast_ref, o_ref, *,
                             bb, length_q, span, head_num, dim_QK, dim_V):
    H, dQK, dV = head_num, dim_QK, dim_V
    HdQK, HdV = H * dQK, H * dV
    Lq = length_q
    rows = bb * span * Lq

    # Fused Q/K/V projections (3 MXU matmuls over the whole bb-item block).
    Q = jnp.dot(q_ref[...], wqt_ref[...], preferred_element_type=jnp.float32)   # (bb*Lq,  H*dQK)
    K = jnp.dot(k_ref[...], wkt_ref[...], preferred_element_type=jnp.float32)   # (bb*Lkv, H*dQK)
    V = jnp.dot(v_ref[...], wvt_ref[...], preferred_element_type=jnp.float32)   # (bb*Lkv, H*dV)

    # Sparse (span, stride) gather for ALL (item, r, t) slots at once: one block-diagonal
    # one-hot matmul per tensor (identity Conv1d == row gather; invalid slots give zero rows).
    # The Conv1d bias (+bias[r] on every component) is a precomputed resident add.
    G = gth_ref[...]                                                             # (rows, bb*Lkv)
    KG = jnp.dot(G, K, preferred_element_type=jnp.float32) + kbias_ref[...]      # (rows, H*dQK)
    VG = jnp.dot(G, V, preferred_element_type=jnp.float32) + vbias_ref[...]      # (rows, H*dV)

    # Per-head scores for all (item, r, t, h) in ONE matmul: elementwise Q*Kg, block-diagonal
    # head-sum (pre-scaled by 1/sqrt(dQK)), then the additive -1e30 validity mask.
    QKG = (KG.reshape(bb, span, Lq, HdQK) * Q.reshape(bb, 1, Lq, HdQK)).reshape(rows, HdQK)
    s = jnp.dot(QKG, hsum_ref[...], preferred_element_type=jnp.float32) + madd_ref[...]
    s4 = s.reshape(bb, span, Lq, H)

    # Softmax over the span axis.  Exact divide (keeps parity with the f32 reference); the
    # r = span-1 slot is always valid so denom >= 1, and masked slots underflow to exactly 0.
    m = jnp.max(s4, axis=1, keepdims=True)
    e = jnp.exp(s4 - m)
    p = e / jnp.sum(e, axis=1, keepdims=True)

    # Value combine: one head-broadcast matmul fans each per-head prob across its dV lanes,
    # the span reduction is a cheap major-axis sum, and the output projection is one matmul.
    w = jnp.dot(p.reshape(rows, H), hbcast_ref[...], preferred_element_type=jnp.float32)  # (rows, H*dV)
    ctx = (w * VG).reshape(bb, span, Lq, HdV).sum(axis=1).reshape(bb * Lq, HdV)
    o_ref[...] = jnp.dot(ctx, wot_ref[...],
                         preferred_element_type=jnp.float32).astype(o_ref.dtype)


# ----------------------------- wrapper -----------------------------

def _pick_batch_block(batch, cfg):
    """Largest divisor of batch whose per-step working set fits a conservative VMEM budget.

    grid == 1 (zero per-step pipeline overhead) is preferred on single-TC v5e/v6e; the
    footprint cap is what matters on v7x (32 MiB scoped-VMEM default of 64 MiB physical).
    """
    Lq, Lkv, span = cfg["length_q"], cfg["length_kv"], cfg["span"]
    H = cfg["head_num"]
    HdQK, HdV = H * cfg["dim_QK"], H * cfg["dim_V"]
    budget = 8 << 20
    best = 1
    for bb in range(1, batch + 1):
        if batch % bb:
            continue
        if bb != batch and ((bb * Lq) % 8 or (bb * Lkv) % 8):
            continue                      # keep the (8,128) sublane rule satisfied for sub-blocks
        rows = bb * span * Lq
        foot = 4 * (rows * (bb * Lkv + 2 * HdQK + 2 * HdV + 3 * H)
                    + bb * (Lq * (cfg["dim_q"] + HdQK + cfg["dim_out"])
                            + Lkv * (cfg["dim_k"] + cfg["dim_v"] + HdQK + HdV)))
        if foot <= budget:
            best = bb
    return best


def _static_constants(bb, cfg):
    """Numpy (trace-time) gather / mask / per-head reduction matrices for a bb-item block."""
    Lq, Lkv = cfg["length_q"], cfg["length_kv"]
    span, stride = cfg["span"], cfg["stride"]
    H, dQK, dV = cfg["head_num"], cfg["dim_QK"], cfg["dim_V"]
    HdQK, HdV = H * dQK, H * dV
    rows = bb * span * Lq

    gather = np.zeros((rows, bb * Lkv), np.float32)      # one-hot row gather (block-diag over bb)
    madd = np.zeros((rows, H), np.float32)               # additive validity mask
    for i in range(bb):
        for r in range(span):
            for t in range(Lq):
                row = (i * span + r) * Lq + t
                j = t * stride + r - (span - 1)
                if 0 <= j < Lkv:
                    gather[row, i * Lkv + j] = 1.0
                else:
                    madd[row, :] = -1e30                 # finite sentinel; exp underflows to 0

    hsum = np.zeros((HdQK, H), np.float32)               # per-head sum over dQK, pre-scaled
    for h in range(H):
        hsum[h * dQK:(h + 1) * dQK, h] = 1.0 / math.sqrt(dQK)
    hbcast = np.zeros((H, HdV), np.float32)              # per-head scalar -> that head's dV lanes
    for h in range(H):
        hbcast[h, h * dV:(h + 1) * dV] = 1.0
    return gather, madd, hsum, hbcast


def sparse_mha_encoder_forward(params, q, k, v, cfg):
    batch = q.shape[0]
    H, dQK, dV = cfg["head_num"], cfg["dim_QK"], cfg["dim_V"]
    HdQK, HdV = H * dQK, H * dV
    Lq, Lkv, span = cfg["length_q"], cfg["length_kv"], cfg["span"]
    dim_q, dim_k, dim_v, dim_out = cfg["dim_q"], cfg["dim_k"], cfg["dim_v"], cfg["dim_out"]

    bb = _pick_batch_block(batch, cfg)
    assert batch % bb == 0
    grid = (batch // bb,)
    rows = bb * span * Lq

    gather_np, madd_np, hsum_np, hbcast_np = _static_constants(bb, cfg)

    # Conv1d bias, pre-broadcast to the gathered-row layout (rows ordered (item, r, t)).
    bias_rows = jnp.tile(jnp.repeat(params["conv_bias"], Lq), bb)[:, None]      # (rows, 1)
    kbias = bias_rows * jnp.ones((1, HdQK), jnp.float32)
    vbias = bias_rows * jnp.ones((1, HdV), jnp.float32)

    # nn.Linear weights are (out, in); the kernel consumes x @ W.T (tiny transpose, fused by XLA).
    wqt, wkt, wvt, wot = (params["WQ"].T, params["WK"].T, params["WV"].T, params["Wout"].T)

    # Flatten (batch, L, d) -> (batch*L, d) outside the kernel (free); the kernel then never
    # needs to reshape the lane (minor) dimension.
    q2 = q.reshape(batch * Lq, dim_q)
    k2 = k.reshape(batch * Lkv, dim_k)
    v2 = v.reshape(batch * Lkv, dim_v)

    kernel = functools.partial(
        _fused_sparse_mha_kernel, bb=bb, length_q=Lq, span=span,
        head_num=H, dim_QK=dQK, dim_V=dV)

    flops = 2 * batch * (Lq * dim_q * HdQK + Lkv * dim_k * HdQK + Lkv * dim_v * HdV
                         + span * Lq * Lkv * (HdQK + HdV)
                         + span * Lq * (HdQK + H * HdV)
                         + Lq * HdV * dim_out)
    bytes_accessed = 4 * (q2.size + k2.size + v2.size + wqt.size + wkt.size + wvt.size
                          + wot.size + batch * Lq * dim_out)
    cost = pl.CostEstimate(flops=flops, transcendentals=batch * span * Lq * H,
                           bytes_accessed=bytes_accessed)

    out2 = pl.pallas_call(
        kernel,
        out_shape=jax.ShapeDtypeStruct((batch * Lq, dim_out), jnp.float32),
        grid=grid,
        in_specs=[
            pl.BlockSpec((bb * Lq, dim_q), lambda b: (b, 0)),          # q rows
            pl.BlockSpec((bb * Lkv, dim_k), lambda b: (b, 0)),         # k rows
            pl.BlockSpec((bb * Lkv, dim_v), lambda b: (b, 0)),         # v rows
            pl.BlockSpec((dim_q, HdQK), lambda b: (0, 0)),             # WQ^T   (resident)
            pl.BlockSpec((dim_k, HdQK), lambda b: (0, 0)),             # WK^T   (resident)
            pl.BlockSpec((dim_v, HdV), lambda b: (0, 0)),              # WV^T   (resident)
            pl.BlockSpec((HdV, dim_out), lambda b: (0, 0)),            # Wout^T (resident)
            pl.BlockSpec((rows, bb * Lkv), lambda b: (0, 0)),          # gather one-hot
            pl.BlockSpec((rows, HdQK), lambda b: (0, 0)),              # conv bias on K rows
            pl.BlockSpec((rows, HdV), lambda b: (0, 0)),               # conv bias on V rows
            pl.BlockSpec((rows, H), lambda b: (0, 0)),                 # additive validity mask
            pl.BlockSpec((HdQK, H), lambda b: (0, 0)),                 # per-head sum (scaled)
            pl.BlockSpec((H, HdV), lambda b: (0, 0)),                  # per-head broadcast
        ],
        out_specs=pl.BlockSpec((bb * Lq, dim_out), lambda b: (b, 0)),
        compiler_params=pltpu.CompilerParams(dimension_semantics=("parallel",)),
        cost_estimate=cost,
    )(q2, k2, v2, wqt, wkt, wvt, wot,
      jnp.asarray(gather_np), kbias, vbias, jnp.asarray(madd_np),
      jnp.asarray(hsum_np), jnp.asarray(hbcast_np))

    return out2.reshape(batch, Lq, dim_out)


# ----------------------------- pure-JAX reference -----------------------------

def reference_forward(params, q, k, v, cfg):
    B = q.shape[0]
    H, dQK, dV = cfg["head_num"], cfg["dim_QK"], cfg["dim_V"]
    Lq, Lkv, span, stride = cfg["length_q"], cfg["length_kv"], cfg["span"], cfg["stride"]
    bias = params["conv_bias"]

    Qp = (q @ params["WQ"].T).reshape(B, Lq, H, dQK)
    Kp = (k @ params["WK"].T).reshape(B, Lkv, H, dQK)
    Vp = (v @ params["WV"].T).reshape(B, Lkv, H, dV)

    r = jnp.arange(span)[:, None]
    t = jnp.arange(Lq)[None, :]
    kvi = r - (span - 1) + t * stride                     # (span, Lq)
    valid = (kvi >= 0) & (kvi < Lkv)
    kvi_c = jnp.clip(kvi, 0, Lkv - 1)

    Kg = jnp.where(valid[None, None, :, :, None],
                   Kp[:, kvi_c].transpose(0, 3, 1, 2, 4), 0.0)        # (B,H,span,Lq,dQK)
    Kg = Kg + bias[None, None, :, None, None]
    scores = jnp.einsum("bqhd,bhrqd->bhrq", Qp, Kg) / math.sqrt(dQK)
    scores = jnp.where(valid[None, None], scores, -jnp.inf)
    p = jax.nn.softmax(scores, axis=2)

    Vg = jnp.where(valid[None, None, :, :, None],
                   Vp[:, kvi_c].transpose(0, 3, 1, 2, 4), 0.0)        # (B,H,span,Lq,dV)
    Vg = Vg + bias[None, None, :, None, None]
    out = jnp.einsum("bhrq,bhrqd->bhqd", p, Vg)
    out = out.transpose(0, 2, 1, 3).reshape(B, Lq, H * dV)
    return (out @ params["Wout"].T).reshape(B, Lq, cfg["dim_out"])


# ----------------------------- main -----------------------------

if __name__ == "__main__":
    cfg = dict(dim_q=16, dim_k=16, dim_v=16, dim_QK=8, dim_V=8, head_num=2,
               dim_out=16, span=4, stride=2, length_q=8, length_kv=16)
    # length_q must equal floor((length_kv - 1) / stride) + 1 (conv output length)
    assert cfg["length_q"] == (cfg["length_kv"] - 1) // cfg["stride"] + 1
    batch = 2
    H = cfg["head_num"]

    key = jax.random.PRNGKey(0)
    kq, kk, kv, kwq, kwk, kwv, kwo, kb = jax.random.split(key, 8)

    q = jax.random.normal(kq, (batch, cfg["length_q"], cfg["dim_q"]), jnp.float32)
    k = jax.random.normal(kk, (batch, cfg["length_kv"], cfg["dim_k"]), jnp.float32)
    v = jax.random.normal(kv, (batch, cfg["length_kv"], cfg["dim_v"]), jnp.float32)

    params = {
        "WQ": jax.random.normal(kwq, (H * cfg["dim_QK"], cfg["dim_q"]), jnp.float32)
              / math.sqrt(cfg["dim_q"]),
        "WK": jax.random.normal(kwk, (H * cfg["dim_QK"], cfg["dim_k"]), jnp.float32)
              / math.sqrt(cfg["dim_k"]),
        "WV": jax.random.normal(kwv, (H * cfg["dim_V"], cfg["dim_v"]), jnp.float32)
              / math.sqrt(cfg["dim_v"]),
        "Wout": jax.random.normal(kwo, (cfg["dim_out"], H * cfg["dim_V"]), jnp.float32)
                / math.sqrt(H * cfg["dim_V"]),
        # nn.Conv1d default bias (not zeroed in the PyTorch module) -- deterministic init.
        "conv_bias": jax.random.normal(kb, (cfg["span"],), jnp.float32) * 0.1,
    }

    fwd = jax.jit(functools.partial(sparse_mha_encoder_forward, cfg=cfg))
    out = fwd(params, q, k, v)
    out = jax.block_until_ready(out)
    assert out.shape == (batch, cfg["length_q"], cfg["dim_out"])

    ref = reference_forward(params, q, k, v, cfg)
    np.testing.assert_allclose(np.asarray(out), np.asarray(ref), atol=1e-4, rtol=1e-4)

    print("KERNEL_OK")
</pallas_src>

<mosaic_0001>
module attributes {stable_mosaic.version = 11 : i64} {
  func.func @_fused_sparse_mha_kernel(%arg0: i32, %arg1: memref<16x16xf32, #tpu.memory_space<vmem>>, %arg2: memref<32x16xf32, #tpu.memory_space<vmem>>, %arg3: memref<32x16xf32, #tpu.memory_space<vmem>>, %arg4: memref<16x16xf32, #tpu.memory_space<vmem>>, %arg5: memref<16x16xf32, #tpu.memory_space<vmem>>, %arg6: memref<16x16xf32, #tpu.memory_space<vmem>>, %arg7: memref<16x16xf32, #tpu.memory_space<vmem>>, %arg8: memref<64x32xf32, #tpu.memory_space<vmem>>, %arg9: memref<64x16xf32, #tpu.memory_space<vmem>>, %arg10: memref<64x16xf32, #tpu.memory_space<vmem>>, %arg11: memref<64x2xf32, #tpu.memory_space<vmem>>, %arg12: memref<16x2xf32, #tpu.memory_space<vmem>>, %arg13: memref<2x16xf32, #tpu.memory_space<vmem>>, %arg14: memref<16x16xf32, #tpu.memory_space<vmem>>) attributes {dimension_semantics = [#tpu.dimension_semantics<parallel>], iteration_bounds = array<i64: 1>, scalar_prefetch = 0 : i64, scratch_operands = 0 : i64, tpu.core_type = #tpu.core_type<tc>, window_params = [{transform_indices = @transform_0, window_bounds = array<i64: 16, 16>}, {transform_indices = @transform_1, window_bounds = array<i64: 32, 16>}, {transform_indices = @transform_2, window_bounds = array<i64: 32, 16>}, {pipeline_mode = #tpu.pipeline_mode<synchronous>, transform_indices = @transform_3, window_bounds = array<i64: 16, 16>}, {pipeline_mode = #tpu.pipeline_mode<synchronous>, transform_indices = @transform_4, window_bounds = array<i64: 16, 16>}, {pipeline_mode = #tpu.pipeline_mode<synchronous>, transform_indices = @transform_5, window_bounds = array<i64: 16, 16>}, {pipeline_mode = #tpu.pipeline_mode<synchronous>, transform_indices = @transform_6, window_bounds = array<i64: 16, 16>}, {pipeline_mode = #tpu.pipeline_mode<synchronous>, transform_indices = @transform_7, window_bounds = array<i64: 64, 32>}, {pipeline_mode = #tpu.pipeline_mode<synchronous>, transform_indices = @transform_8, window_bounds = array<i64: 64, 16>}, {pipeline_mode = #tpu.pipeline_mode<synchronous>, transform_indices = @transform_9, window_bounds = array<i64: 64, 16>}, {pipeline_mode = #tpu.pipeline_mode<synchronous>, transform_indices = @transform_10, window_bounds = array<i64: 64, 2>}, {pipeline_mode = #tpu.pipeline_mode<synchronous>, transform_indices = @transform_11, window_bounds = array<i64: 16, 2>}, {pipeline_mode = #tpu.pipeline_mode<synchronous>, transform_indices = @transform_12, window_bounds = array<i64: 2, 16>}, {transform_indices = @transform_13, window_bounds = array<i64: 16, 16>}]} {
    %c0 = arith.constant 0 : index
    %c0_0 = arith.constant 0 : index
    %0 = vector.load %arg1[%c0, %c0_0] : memref<16x16xf32, #tpu.memory_space<vmem>>, vector<16x16xf32>
    %c0_1 = arith.constant 0 : index
    %c0_2 = arith.constant 0 : index
    %1 = vector.load %arg4[%c0_1, %c0_2] : memref<16x16xf32, #tpu.memory_space<vmem>>, vector<16x16xf32>
    %cst = arith.constant dense<0.000000e+00> : vector<16x16xf32>
    %2 = tpu.matmul %0, %1, %cst {dimension_numbers = #tpu.dot_dimension_numbers<[1], [0], [0], [1], [0, 0, 1, 1], [], []>} : vector<16x16xf32>, vector<16x16xf32>, vector<16x16xf32> -> vector<16x16xf32>
    %c0_3 = arith.constant 0 : index
    %c0_4 = arith.constant 0 : index
    %3 = vector.load %arg2[%c0_3, %c0_4] : memref<32x16xf32, #tpu.memory_space<vmem>>, vector<32x16xf32>
    %c0_5 = arith.constant 0 : index
    %c0_6 = arith.constant 0 : index
    %4 = vector.load %arg5[%c0_5, %c0_6] : memref<16x16xf32, #tpu.memory_space<vmem>>, vector<16x16xf32>
    %cst_7 = arith.constant dense<0.000000e+00> : vector<32x16xf32>
    %5 = tpu.matmul %3, %4, %cst_7 {dimension_numbers = #tpu.dot_dimension_numbers<[1], [0], [0], [1], [0, 0, 1, 1], [], []>} : vector<32x16xf32>, vector<16x16xf32>, vector<32x16xf32> -> vector<32x16xf32>
    %c0_8 = arith.constant 0 : index
    %c0_9 = arith.constant 0 : index
    %6 = vector.load %arg3[%c0_8, %c0_9] : memref<32x16xf32, #tpu.memory_space<vmem>>, vector<32x16xf32>
    %c0_10 = arith.constant 0 : index
    %c0_11 = arith.constant 0 : index
    %7 = vector.load %arg6[%c0_10, %c0_11] : memref<16x16xf32, #tpu.memory_space<vmem>>, vector<16x16xf32>
    %cst_12 = arith.constant dense<0.000000e+00> : vector<32x16xf32>
    %8 = tpu.matmul %6, %7, %cst_12 {dimension_numbers = #tpu.dot_dimension_numbers<[1], [0], [0], [1], [0, 0, 1, 1], [], []>} : vector<32x16xf32>, vector<16x16xf32>, vector<32x16xf32> -> vector<32x16xf32>
    %c0_13 = arith.constant 0 : index
    %c0_14 = arith.constant 0 : index
    %9 = vector.load %arg8[%c0_13, %c0_14] : memref<64x32xf32, #tpu.memory_space<vmem>>, vector<64x32xf32>
    %cst_15 = arith.constant dense<0.000000e+00> : vector<64x16xf32>
    %10 = tpu.matmul %9, %5, %cst_15 {dimension_numbers = #tpu.dot_dimension_numbers<[1], [0], [0], [1], [0, 0, 1, 1], [], []>} : vector<64x32xf32>, vector<32x16xf32>, vector<64x16xf32> -> vector<64x16xf32>
    %c0_16 = arith.constant 0 : index
    %c0_17 = arith.constant 0 : index
    %11 = vector.load %arg9[%c0_16, %c0_17] : memref<64x16xf32, #tpu.memory_space<vmem>>, vector<64x16xf32>
    %12 = arith.addf %10, %11 : vector<64x16xf32>
    %cst_18 = arith.constant dense<0.000000e+00> : vector<64x16xf32>
    %13 = tpu.matmul %9, %8, %cst_18 {dimension_numbers = #tpu.dot_dimension_numbers<[1], [0], [0], [1], [0, 0, 1, 1], [], []>} : vector<64x32xf32>, vector<32x16xf32>, vector<64x16xf32> -> vector<64x16xf32>
    %c0_19 = arith.constant 0 : index
    %c0_20 = arith.constant 0 : index
    %14 = vector.load %arg10[%c0_19, %c0_20] : memref<64x16xf32, #tpu.memory_space<vmem>>, vector<64x16xf32>
    %15 = arith.addf %13, %14 : vector<64x16xf32>
    %16 = vector.shape_cast %12 : vector<64x16xf32> to vector<2x4x8x16xf32>
    %17 = vector.shape_cast %2 : vector<16x16xf32> to vector<2x1x8x16xf32>
    %18 = vector.broadcast %17 : vector<2x1x8x16xf32> to vector<2x4x8x16xf32>
    %19 = arith.mulf %16, %18 : vector<2x4x8x16xf32>
    %20 = vector.shape_cast %19 : vector<2x4x8x16xf32> to vector<64x16xf32>
    %c0_21 = arith.constant 0 : index
    %c0_22 = arith.constant 0 : index
    %21 = vector.load %arg12[%c0_21, %c0_22] : memref<16x2xf32, #tpu.memory_space<vmem>>, vector<16x2xf32>
    %cst_23 = arith.constant dense<0.000000e+00> : vector<64x2xf32>
    %22 = tpu.matmul %20, %21, %cst_23 {dimension_numbers = #tpu.dot_dimension_numbers<[1], [0], [0], [1], [0, 0, 1, 1], [], []>} : vector<64x16xf32>, vector<16x2xf32>, vector<64x2xf32> -> vector<64x2xf32>
    %c0_24 = arith.constant 0 : index
    %c0_25 = arith.constant 0 : index
    %23 = vector.load %arg11[%c0_24, %c0_25] : memref<64x2xf32, #tpu.memory_space<vmem>>, vector<64x2xf32>
    %24 = arith.addf %22, %23 : vector<64x2xf32>
    %25 = vector.shape_cast %24 : vector<64x2xf32> to vector<2x4x8x2xf32>
    %cst_26 = arith.constant dense<0xFF800000> : vector<2x8x2xf32>
    %26 = vector.multi_reduction <maximumf>, %25, %cst_26 [1] : vector<2x4x8x2xf32> to vector<2x8x2xf32>
    %27 = vector.shape_cast %26 : vector<2x8x2xf32> to vector<2x1x8x2xf32>
    %28 = vector.broadcast %27 : vector<2x1x8x2xf32> to vector<2x4x8x2xf32>
    %29 = arith.subf %25, %28 : vector<2x4x8x2xf32>
    %30 = math.exp %29 : vector<2x4x8x2xf32>
    %cst_27 = arith.constant dense<0.000000e+00> : vector<2x8x2xf32>
    %31 = vector.multi_reduction <add>, %30, %cst_27 [1] : vector<2x4x8x2xf32> to vector<2x8x2xf32>
    %32 = vector.shape_cast %31 : vector<2x8x2xf32> to vector<2x1x8x2xf32>
    %33 = vector.broadcast %32 : vector<2x1x8x2xf32> to vector<2x4x8x2xf32>
    %34 = arith.divf %30, %33 : vector<2x4x8x2xf32>
    %35 = vector.shape_cast %34 : vector<2x4x8x2xf32> to vector<64x2xf32>
    %c0_28 = arith.constant 0 : index
    %c0_29 = arith.constant 0 : index
    %36 = vector.load %arg13[%c0_28, %c0_29] : memref<2x16xf32, #tpu.memory_space<vmem>>, vector<2x16xf32>
    %cst_30 = arith.constant dense<0.000000e+00> : vector<64x16xf32>
    %37 = tpu.matmul %35, %36, %cst_30 {dimension_numbers = #tpu.dot_dimension_numbers<[1], [0], [0], [1], [0, 0, 1, 1], [], []>} : vector<64x2xf32>, vector<2x16xf32>, vector<64x16xf32> -> vector<64x16xf32>
    %38 = arith.mulf %37, %15 : vector<64x16xf32>
    %39 = vector.shape_cast %38 : vector<64x16xf32> to vector<2x4x8x16xf32>
    %cst_31 = arith.constant dense<0.000000e+00> : vector<2x8x16xf32>
    %40 = vector.multi_reduction <add>, %39, %cst_31 [1] : vector<2x4x8x16xf32> to vector<2x8x16xf32>
    %41 = vector.shape_cast %40 : vector<2x8x16xf32> to vector<16x16xf32>
    %c0_32 = arith.constant 0 : index
    %c0_33 = arith.constant 0 : index
    %42 = vector.load %arg7[%c0_32, %c0_33] : memref<16x16xf32, #tpu.memory_space<vmem>>, vector<16x16xf32>
    %cst_34 = arith.constant dense<0.000000e+00> : vector<16x16xf32>
    %43 = tpu.matmul %41, %42, %cst_34 {dimension_numbers = #tpu.dot_dimension_numbers<[1], [0], [0], [1], [0, 0, 1, 1], [], []>} : vector<16x16xf32>, vector<16x16xf32>, vector<16x16xf32> -> vector<16x16xf32>
    %c0_35 = arith.constant 0 : index
    %c0_36 = arith.constant 0 : index
    %44 = vector.load %arg14[%c0_35, %c0_36] : memref<16x16xf32, #tpu.memory_space<vmem>>, vector<16x16xf32>
    tpu.vector_store %arg14[%c0_35, %c0_36], %43 {strides = array<i32>} : memref<16x16xf32, #tpu.memory_space<vmem>>, vector<16x16xf32>,
    return
  }
  func.func @transform_0(%arg0: i32) -> (i32, i32) {
    %c0_i32 = arith.constant 0 : i32
    %c0_i32_0 = arith.constant 0 : i32
    return %arg0, %c0_i32 : i32, i32
  }
  func.func @transform_1(%arg0: i32) -> (i32, i32) {
    %c0_i32 = arith.constant 0 : i32
    %c0_i32_0 = arith.constant 0 : i32
    return %arg0, %c0_i32 : i32, i32
  }
  func.func @transform_2(%arg0: i32) -> (i32, i32) {
    %c0_i32 = arith.constant 0 : i32
    %c0_i32_0 = arith.constant 0 : i32
    return %arg0, %c0_i32 : i32, i32
  }
  func.func @transform_3(%arg0: i32) -> (i32, i32) {
    %c0_i32 = arith.constant 0 : i32
    %c0_i32_0 = arith.constant 0 : i32
    %c0_i32_1 = arith.constant 0 : i32
    return %c0_i32, %c0_i32_0 : i32, i32
  }
  func.func @transform_4(%arg0: i32) -> (i32, i32) {
    %c0_i32 = arith.constant 0 : i32
    %c0_i32_0 = arith.constant 0 : i32
    %c0_i32_1 = arith.constant 0 : i32
    return %c0_i32, %c0_i32_0 : i32, i32
  }
  func.func @transform_5(%arg0: i32) -> (i32, i32) {
    %c0_i32 = arith.constant 0 : i32
    %c0_i32_0 = arith.constant 0 : i32
    %c0_i32_1 = arith.constant 0 : i32
    return %c0_i32, %c0_i32_0 : i32, i32
  }
  func.func @transform_6(%arg0: i32) -> (i32, i32) {
    %c0_i32 = arith.constant 0 : i32
    %c0_i32_0 = arith.constant 0 : i32
    %c0_i32_1 = arith.constant 0 : i32
    return %c0_i32, %c0_i32_0 : i32, i32
  }
  func.func @transform_7(%arg0: i32) -> (i32, i32) {
    %c0_i32 = arith.constant 0 : i32
    %c0_i32_0 = arith.constant 0 : i32
    %c0_i32_1 = arith.constant 0 : i32
    return %c0_i32, %c0_i32_0 : i32, i32
  }
  func.func @transform_8(%arg0: i32) -> (i32, i32) {
    %c0_i32 = arith.constant 0 : i32
    %c0_i32_0 = arith.constant 0 : i32
    %c0_i32_1 = arith.constant 0 : i32
    return %c0_i32, %c0_i32_0 : i32, i32
  }
  func.func @transform_9(%arg0: i32) -> (i32, i32) {
    %c0_i32 = arith.constant 0 : i32
    %c0_i32_0 = arith.constant 0 : i32
    %c0_i32_1 = arith.constant 0 : i32
    return %c0_i32, %c0_i32_0 : i32, i32
  }
  func.func @transform_10(%arg0: i32) -> (i32, i32) {
    %c0_i32 = arith.constant 0 : i32
    %c0_i32_0 = arith.constant 0 : i32
    %c0_i32_1 = arith.constant 0 : i32
    return %c0_i32, %c0_i32_0 : i32, i32
  }
  func.func @transform_11(%arg0: i32) -> (i32, i32) {
    %c0_i32 = arith.constant 0 : i32
    %c0_i32_0 = arith.constant 0 : i32
    %c0_i32_1 = arith.constant 0 : i32
    return %c0_i32, %c0_i32_0 : i32, i32
  }
  func.func @transform_12(%arg0: i32) -> (i32, i32) {
    %c0_i32 = arith.constant 0 : i32
    %c0_i32_0 = arith.constant 0 : i32
    %c0_i32_1 = arith.constant 0 : i32
    return %c0_i32, %c0_i32_0 : i32, i32
  }
  func.func @transform_13(%arg0: i32) -> (i32, i32) {
    %c0_i32 = arith.constant 0 : i32
    %c0_i32_0 = arith.constant 0 : i32
    return %arg0, %c0_i32 : i32, i32
  }
}

</mosaic_0001>

<llo_original>
// kernel: tile.6
$region0: #{tile.6}
  #allocation0 [shape = 's32[1]{0}', space=sflag, size = 0x4, scoped, tag = 'scoped memory for tile.6']
  %s0 = inlined_call_operand.vmem [shape: f32[32], index: 0, kind: input, shape index: {}]
  %s1 = inlined_call_operand.vmem [shape: f32[2,32], index: 1, kind: output, shape index: {}]
  // Predicated region
  $region2: #{tile.6} parent=0 // pred_check
    _
  $region3: #{tile.6} parent=0 // pred_check_branch
    %3 = sbr.rel (0) target = $region5
  $region4: #{tile.6} parent=0 // pred_region
    _
  $region5: #{tile.6} parent=0 // pred_fallthru
    _
  %v4 = vld [vmem:[%s0] ss:$0 sm:$0xff]
  %5 = vst [vmem:[%s1] sm:$0x3] %v4

// kernel: mul.7
$region0: #{mul.7}
  %s0 = inlined_call_operand.vmem [shape: f32[2,32], index: 0, kind: input, shape index: {}]
  %s1 = inlined_call_operand.vmem [shape: f32[64], index: 1, kind: output, shape index: {}]
  $region1: #{mul.7} parent=0
    #allocation0 [shape = 'u8[4096]{0}', space=vmem, size = 0x1000, scoped, tag = 'scoped mem for output reshape']
    #allocation1 [shape = 'u8[4096]{0}', space=vmem, size = 0x1000, scoped, tag = 'scoped mem for input reshape']
    %s3 = sshllo.u32 0, 2
    %v4 = vld [vmem:[%s0] sm:%s3]
    %5 = vst [vmem:[#allocation1] sm:%s3] %v4
    %v6 = vld [vmem:[#allocation1] sm:$0x1]
    %vm7 = vcmask 261120
    %8 = vst.msk [vmem:[#allocation0] sm:$0x1] %vm7, %v6
    %s9 = scalar_lea.vmem [#allocation1], 1
    %v10 = vld [vmem:[%s9] sm:$0x1]
    %11 = vrot.lane.b32.xlu0 %v10, 32
    %v12 = vpop.permute.xlu0 %11
    %vm13 = vcmask 523520
    %14 = vst.msk [vmem:[#allocation0] sm:$0x1] %vm13, %v12
    %s16 = sshllo.u32 0, 1
    %v18 = vld [vmem:[#allocation0] sm:%s16]
    %s19 = sshllo.u32 0, 1
    %20 = vst [vmem:[%s1] sm:%s19] %v18

// kernel: tile.5
$region0: #{tile.5}
  %s0 = inlined_call_operand.vmem [shape: f32[4,8], index: 0, kind: input, shape index: {}]
  %s1 = inlined_call_operand.vmem [shape: f32[32], index: 1, kind: output, shape index: {}]
  $region1: #{tile.5} parent=0
    #allocation0 [shape = 'u8[4096]{0}', space=vmem, size = 0x1000, scoped, tag = 'scoped mem for output reshape']
    #allocation1 [shape = 'u8[4096]{0}', space=vmem, size = 0x1000, scoped, tag = 'scoped mem for input reshape']
    %s3 = sshllo.u32 0, 4
    %v4 = vld [vmem:[%s0] sm:%s3]
    %5 = vst [vmem:[#allocation1] sm:%s3] %v4
    %v6 = vld [vmem:[#allocation1] sm:$0x1]
    %vm7 = vcmask 64512
    %8 = vst.msk [vmem:[#allocation0] sm:$0x1] %vm7, %v6
    %s9 = scalar_lea.vmem [#allocation1], 3
    %v10 = vld [vmem:[%s9] sm:$0x1]
    %11 = vrot.lane.b32.xlu0 %v10, 24
    %v12 = vpop.permute.xlu0 %11
    %vm13 = vcmask 261312
    %14 = vst.msk [vmem:[#allocation0] sm:$0x1] %vm13, %v12
    %s15 = scalar_lea.vmem [#allocation1], 2
    %v16 = vld [vmem:[%s15] sm:$0x1]
    %17 = vrot.lane.b32.xlu0 %v16, 16
    %v18 = vpop.permute.xlu0 %17
    %vm19 = vcmask 195712
    %20 = vst.msk [vmem:[#allocation0] sm:$0x1] %vm19, %v18
    %s21 = scalar_lea.vmem [#allocation1], 1
    %v22 = vld [vmem:[%s21] sm:$0x1]
    %23 = vrot.lane.b32.xlu0 %v22, 8
    %v24 = vpop.permute.xlu0 %23
    %vm25 = vcmask 130112
    %26 = vst.msk [vmem:[#allocation0] sm:$0x1] %vm25, %v24
    %s28 = sshllo.u32 0, 1
    %v30 = vld [vmem:[#allocation0] sm:%s28]
    %s31 = sshllo.u32 0, 1
    %32 = vst [vmem:[%s1] sm:%s31] %v30

// kernel: mul.8
$region0: #{mul.8}
  #allocation0 [shape = 's32[1]{0}', space=sflag, size = 0x4, scoped, tag = 'scoped memory for mul.8']
  %s0 = inlined_call_operand.vmem [shape: f32[64], index: 0, kind: input, shape index: {}]
  %s1 = inlined_call_operand.vmem [shape: f32[64,16], index: 1, kind: output, shape index: {}]
  // Predicated region
  $region2: #{mul.8} parent=0 // pred_check
    _
  $region3: #{mul.8} parent=0 // pred_check_branch
    %3 = sbr.rel (0) target = $region5
  $region4: #{mul.8} parent=0 // pred_region
    _
  $region5: #{mul.8} parent=0 // pred_fallthru
    _
  %v4 = vld [vmem:[%s0] ss:$0 sm:$0xff]
  %6 = vbcast.lane.b32.xlu0 %v4, 256
  %v7 = vpop.permute.xlu0 %6
  %8 = vst [vmem:[%s1] sm:$0xff] %v7
  %v9 = vld [vmem:[%s0] ss:$0 sm:$0xff]
  %s11 = sor.u32 256, 8
  %12 = vbcast.lane.b32.xlu0 %v9, %s11
  %v13 = vpop.permute.xlu0 %12
  %s14 = scalar_lea.vmem %s1, 8
  %15 = vst [vmem:[%s14] sm:$0xff] %v13
  %v16 = vld [vmem:[%s0] ss:$0 sm:$0xff]
  %s18 = sor.u32 256, 16
  %19 = vbcast.lane.b32.xlu0 %v16, %s18
  %v20 = vpop.permute.xlu0 %19
  %s21 = scalar_lea.vmem %s1, 16
  %22 = vst [vmem:[%s21] sm:$0xff] %v20
  %v23 = vld [vmem:[%s0] ss:$0 sm:$0xff]
  %s25 = sor.u32 256, 24
  %26 = vbcast.lane.b32.xlu0 %v23, %s25
  %v27 = vpop.permute.xlu0 %26
  %s28 = scalar_lea.vmem %s1, 24
  %29 = vst [vmem:[%s28] sm:$0xff] %v27
  %v30 = vld [vmem:[%s0] ss:$0 sm:$0xff]
  %s32 = sor.u32 256, 32
  %33 = vbcast.lane.b32.xlu0 %v30, %s32
  %v34 = vpop.permute.xlu0 %33
  %s35 = scalar_lea.vmem %s1, 32
  %36 = vst [vmem:[%s35] sm:$0xff] %v34
  %v37 = vld [vmem:[%s0] ss:$0 sm:$0xff]
  %s39 = sor.u32 256, 40
  %40 = vbcast.lane.b32.xlu0 %v37, %s39
  %v41 = vpop.permute.xlu0 %40
  %s42 = scalar_lea.vmem %s1, 40
  %43 = vst [vmem:[%s42] sm:$0xff] %v41
  %v44 = vld [vmem:[%s0] ss:$0 sm:$0xff]
  %s46 = sor.u32 256, 48
  %47 = vbcast.lane.b32.xlu0 %v44, %s46
  %v48 = vpop.permute.xlu0 %47
  %s49 = scalar_lea.vmem %s1, 48
  %50 = vst [vmem:[%s49] sm:$0xff] %v48
  %v51 = vld [vmem:[%s0] ss:$0 sm:$0xff]
  %s53 = sor.u32 256, 56
  %54 = vbcast.lane.b32.xlu0 %v51, %s53
  %v55 = vpop.permute.xlu0 %54
  %s56 = scalar_lea.vmem %s1, 56
  %57 = vst [vmem:[%s56] sm:$0xff] %v55

// kernel: sparse_mha_encoder_forward.1
$region0: #{sparse_mha_encoder_forward.1}
  #allocation0 [shape = 'u32[]', space=smem, size = 0x4, offset = 0x4, fixed_abs, tag = 'smem constant byte address 0x4 - core index']
  #allocation1 [shape = 'u32[144,128]{1,0:T(1,128)}', space=vmem, size = 0x12000, scoped, tag = 'internal scratch']
  %s0 = inlined_call_operand.vmem [shape: f32[16,16], index: 0, kind: input, shape index: {}]
  %s1 = inlined_call_operand.vmem [shape: f32[32,16], index: 1, kind: input, shape index: {}]
  %s2 = inlined_call_operand.vmem [shape: f32[32,16], index: 2, kind: input, shape index: {}]
  %s3 = inlined_call_operand.vmem [shape: f32[16,16], index: 3, kind: input, shape index: {}]
  %s4 = inlined_call_operand.vmem [shape: f32[16,16], index: 4, kind: input, shape index: {}]
  %s5 = inlined_call_operand.vmem [shape: f32[16,16], index: 5, kind: input, shape index: {}]
  %s6 = inlined_call_operand.vmem [shape: f32[16,16], index: 6, kind: input, shape index: {}]
  %s7 = inlined_call_operand.vmem [shape: f32[64,32], index: 7, kind: input, shape index: {}]
  %s8 = inlined_call_operand.vmem [shape: f32[64,16], index: 8, kind: input, shape index: {}, may-alias: {8,9}]
  %s9 = inlined_call_operand.vmem [shape: f32[64,16], index: 9, kind: input, shape index: {}, may-alias: {8,9}]
  %s10 = inlined_call_operand.vmem [shape: f32[64,2], index: 10, kind: input, shape index: {}]
  %s11 = inlined_call_operand.vmem [shape: f32[16,2], index: 11, kind: input, shape index: {}]
  %s12 = inlined_call_operand.vmem [shape: f32[2,16], index: 12, kind: input, shape index: {}]
  %s13 = inlined_call_operand.hbm [shape: f32[16,16], index: 13, kind: output, shape index: {}]
  %s14 = sld [smem:[#allocation0]]
  $region62: #{sparse_mha_encoder_forward.1} parent=0
    _
  %s16 = ssub.s32 1, %s14
  %s17 = scalar_select 0, %s16, %s14
  $region1: #{sparse_mha_encoder_forward.1} parent=0
    #allocation2 [shape = 'u8[8192]{0}', space=vmem, size = 0x2000, scoped, tag = 'output window, operand 0, single buffered']
    #allocation3 [shape = 's32[1]{0}', space=sflag, size = 0x4, scoped, tag = 'scoped memory for sparse_mha_encoder_forward.1']
    %18 = vsyncpa [#allocation3], 0
    // Predicated region
    $region2: #{sparse_mha_encoder_forward.1} parent=1 // pred_check
      _
    $region3: #{sparse_mha_encoder_forward.1} parent=1 // pred_check_branch
      %20 = sbr.rel (0) target = $region5
    $region4: #{sparse_mha_encoder_forward.1} parent=1 // pred_region
      _
    $region5: #{sparse_mha_encoder_forward.1} parent=1 // pred_fallthru
      _
    // Predicated region
    $region6: #{sparse_mha_encoder_forward.1} parent=1 // pred_check
      _
    $region7: #{sparse_mha_encoder_forward.1} parent=1 // pred_check_branch
      %22 = sbr.rel (0) target = $region9
    $region8: #{sparse_mha_encoder_forward.1} parent=1 // pred_region
      _
    $region9: #{sparse_mha_encoder_forward.1} parent=1 // pred_fallthru
      _
    // Predicated region
    $region10: #{sparse_mha_encoder_forward.1} parent=1 // pred_check
      _
    $region11: #{sparse_mha_encoder_forward.1} parent=1 // pred_check_branch
      %24 = sbr.rel (0) target = $region13
    $region12: #{sparse_mha_encoder_forward.1} parent=1 // pred_region
      _
    $region13: #{sparse_mha_encoder_forward.1} parent=1 // pred_fallthru
      _
    // Predicated region
    $region14: #{sparse_mha_encoder_forward.1} parent=1 // pred_check
      _
    $region15: #{sparse_mha_encoder_forward.1} parent=1 // pred_check_branch
      %26 = sbr.rel (0) target = $region17
    $region16: #{sparse_mha_encoder_forward.1} parent=1 // pred_region
      _
    $region17: #{sparse_mha_encoder_forward.1} parent=1 // pred_fallthru
      _
    // Predicated region
    $region18: #{sparse_mha_encoder_forward.1} parent=1 // pred_check
      _
    $region19: #{sparse_mha_encoder_forward.1} parent=1 // pred_check_branch
      %28 = sbr.rel (0) target = $region21
    $region20: #{sparse_mha_encoder_forward.1} parent=1 // pred_region
      _
    $region21: #{sparse_mha_encoder_forward.1} parent=1 // pred_fallthru
      _
    // Predicated region
    $region22: #{sparse_mha_encoder_forward.1} parent=1 // pred_check
      _
    $region23: #{sparse_mha_encoder_forward.1} parent=1 // pred_check_branch
      %30 = sbr.rel (0) target = $region25
    $region24: #{sparse_mha_encoder_forward.1} parent=1 // pred_region
      _
    $region25: #{sparse_mha_encoder_forward.1} parent=1 // pred_fallthru
      _
    // Predicated region
    $region26: #{sparse_mha_encoder_forward.1} parent=1 // pred_check
      _
    $region27: #{sparse_mha_encoder_forward.1} parent=1 // pred_check_branch
      %32 = sbr.rel (0) target = $region29
    $region28: #{sparse_mha_encoder_forward.1} parent=1 // pred_region
      _
    $region29: #{sparse_mha_encoder_forward.1} parent=1 // pred_fallthru
      _
    // Predicated region
    $region30: #{sparse_mha_encoder_forward.1} parent=1 // pred_check
      _
    $region31: #{sparse_mha_encoder_forward.1} parent=1 // pred_check_branch
      %34 = sbr.rel (0) target = $region33
    $region32: #{sparse_mha_encoder_forward.1} parent=1 // pred_region
      _
    $region33: #{sparse_mha_encoder_forward.1} parent=1 // pred_fallthru
      _
    // Predicated region
    $region34: #{sparse_mha_encoder_forward.1} parent=1 // pred_check
      _
    $region35: #{sparse_mha_encoder_forward.1} parent=1 // pred_check_branch
      %36 = sbr.rel (0) target = $region37
    $region36: #{sparse_mha_encoder_forward.1} parent=1 // pred_region
      _
    $region37: #{sparse_mha_encoder_forward.1} parent=1 // pred_fallthru
      _
    // Predicated region
    $region38: #{sparse_mha_encoder_forward.1} parent=1 // pred_check
      _
    $region39: #{sparse_mha_encoder_forward.1} parent=1 // pred_check_branch
      %38 = sbr.rel (0) target = $region41
    $region40: #{sparse_mha_encoder_forward.1} parent=1 // pred_region
      _
    $region41: #{sparse_mha_encoder_forward.1} parent=1 // pred_fallthru
      _
    // Predicated region
    $region42: #{sparse_mha_encoder_forward.1} parent=1 // pred_check
      _
    $region43: #{sparse_mha_encoder_forward.1} parent=1 // pred_check_branch
      %40 = sbr.rel (0) target = $region45
    $region44: #{sparse_mha_encoder_forward.1} parent=1 // pred_region
      _
    $region45: #{sparse_mha_encoder_forward.1} parent=1 // pred_fallthru
      _
    // Predicated region
    $region46: #{sparse_mha_encoder_forward.1} parent=1 // pred_check
      _
    $region47: #{sparse_mha_encoder_forward.1} parent=1 // pred_check_branch
      %42 = sbr.rel (0) target = $region49
    $region48: #{sparse_mha_encoder_forward.1} parent=1 // pred_region
      _
    $region49: #{sparse_mha_encoder_forward.1} parent=1 // pred_fallthru
      _
    // Predicated region
    $region50: #{sparse_mha_encoder_forward.1} parent=1 // pred_check
      _
    $region51: #{sparse_mha_encoder_forward.1} parent=1 // pred_check_branch
      %44 = sbr.rel (0) target = $region53
    $region52: #{sparse_mha_encoder_forward.1} parent=1 // pred_region
      _
    $region53: #{sparse_mha_encoder_forward.1} parent=1 // pred_fallthru
      _
    %v45 = vld [vmem:[%s0] sm:$0xff]
    %v46 = vld [vmem:[%s0 + $0x8] sm:$0xff]
    %v47 = vld [vmem:[%s3] sm:$0xff]
    %v48 = vld [vmem:[%s3 + $0x8] sm:$0xff]
    %vm49 = vcmask 130048
    %v51 = vsel %vm49, %v45, 0
    %v54 = vsel %vm49, %v46, 0
    %56 = vmatprep.subr.mxu0 0.0
    %57 = vmatpush1.msra.mxu0 %v47
    %58 = vmatprep.subr.mxu0 0.0
    %59 = vmatpush1.msra.mxu0 %v48
    %60 = vmatprep.subr.mxu0 0.0
    %61 = vmatpush1.msra.mxu0 0.0
    %62 = vmatprep.subr.mxu0 0.0
    %63 = vmatpush1.msra.mxu0 0.0
    %64 = vmatprep.subr.mxu0 0.0
    %65 = vmatpush1.msra.mxu0 0.0
    %66 = vmatprep.subr.mxu0 0.0
    %67 = vmatpush1.msra.mxu0 0.0
    %68 = vmatprep.subr.mxu0 0.0
    %69 = vmatpush1.msra.mxu0 0.0
    %70 = vmatprep.subr.mxu0 0.0
    %71 = vmatpush1.msra.mxu0 0.0
    %72 = vmatprep.subr.mxu0 0.0
    %73 = vmatpush1.msra.mxu0 0.0
    %74 = vmatprep.subr.mxu0 0.0
    %75 = vmatpush1.msra.mxu0 0.0
    %76 = vmatprep.subr.mxu0 0.0
    %77 = vmatpush1.msra.mxu0 0.0
    %78 = vmatprep.subr.mxu0 0.0
    %79 = vmatpush1.msra.mxu0 0.0
    %80 = vmatprep.subr.mxu0 0.0
    %81 = vmatpush1.msra.mxu0 0.0
    %82 = vmatprep.subr.mxu0 0.0
    %83 = vmatpush1.msra.mxu0 0.0
    %84 = vmatprep.subr.mxu0 0.0
    %85 = vmatpush1.msra.mxu0 0.0
    %86 = vmatprep.subr.mxu0 0.0
    %87 = vmatpush1.msra.mxu0 0.0
    %88 = vmatprep.subr.mxu0 0.0
    %89 = vmatpush1.msra.mxu0 0.0
    %90 = vmatprep.subr.mxu0 0.0
    %91 = vmatpush1.msra.mxu0 0.0
    %92 = vmatprep.subr.mxu0 0.0
    %93 = vmatpush1.msra.mxu0 0.0
    %94 = vmatprep.subr.mxu0 0.0
    %95 = vmatpush1.msra.mxu0 0.0
    %96 = vmatprep.subr.mxu0 0.0
    %97 = vmatpush1.msra.mxu0 0.0
    %98 = vmatprep.subr.mxu0 0.0
    %99 = vmatpush1.msra.mxu0 0.0
    %100 = vmatprep.subr.mxu0 0.0
    %101 = vmatpush1.msra.mxu0 0.0
    %102 = vmatprep.subr.mxu0 0.0
    %103 = vmatpush1.msra.mxu0 0.0
    %104 = vmatprep.subr.mxu0 0.0
    %105 = vmatpush1.msra.mxu0 0.0
    %106 = vmatprep.subr.mxu0 0.0
    %107 = vmatpush1.msra.mxu0 0.0
    %108 = vmatprep.subr.mxu0 0.0
    %109 = vmatpush1.msra.mxu0 0.0
    %110 = vmatprep.subr.mxu0 0.0
    %111 = vmatpush1.msra.mxu0 0.0
    %112 = vmatprep.subr.mxu0 0.0
    %113 = vmatpush1.msra.mxu0 0.0
    %114 = vmatprep.subr.mxu0 0.0
    %115 = vmatpush1.msra.mxu0 0.0
    %116 = vmatprep.subr.mxu0 0.0
    %117 = vmatpush1.msra.mxu0 0.0
    %118 = vmatprep.subr.mxu0 0.0
    %119 = vmatpush1.msra.mxu0 0.0
    %120 = vmatprep.mubr.f32.mxu0 0.0
    %121 = vmatmul.mubr.f32.gmra.mrb[0].mxu0 %v51
    %v122 = vpop.f32.mrb[0].mxu0
    %v123 = vadd.f32 0.0, %v122
    %v124 = vpop.f32.mrb[0].mxu0
    %125 = vmatprep.mubr.f32.mxu0 0.0
    %126 = vmatmul.mubr.f32.gmra.mrb[0].mxu0 %v54
    %v127 = vpop.f32.mrb[0].mxu0
    %v128 = vadd.f32 0.0, %v127
    %v129 = vpop.f32.mrb[0].mxu0
    %130 = vdwg.mxu0
    %v131 = vld [vmem:[%s1] sm:$0xff]
    %v132 = vld [vmem:[%s1 + $0x8] sm:$0xff]
    %v133 = vld [vmem:[%s1 + $0x10] sm:$0xff]
    %v134 = vld [vmem:[%s1 + $0x18] sm:$0xff]
    %v135 = vld [vmem:[%s4] sm:$0xff]
    %v136 = vld [vmem:[%s4 + $0x8] sm:$0xff]
    %v138 = vsel %vm49, %v131, 0
    %v141 = vsel %vm49, %v132, 0
    %v144 = vsel %vm49, %v133, 0
    %v147 = vsel %vm49, %v134, 0
    %149 = vmatprep.subr.mxu0 0.0
    %150 = vmatpush1.msra.mxu0 %v135
    %151 = vmatprep.subr.mxu0 0.0
    %152 = vmatpush1.msra.mxu0 %v136
    %153 = vmatprep.subr.mxu0 0.0
    %154 = vmatpush1.msra.mxu0 0.0
    %155 = vmatprep.subr.mxu0 0.0
    %156 = vmatpush1.msra.mxu0 0.0
    %157 = vmatprep.subr.mxu0 0.0
    %158 = vmatpush1.msra.mxu0 0.0
    %159 = vmatprep.subr.mxu0 0.0
    %160 = vmatpush1.msra.mxu0 0.0
    %161 = vmatprep.subr.mxu0 0.0
    %162 = vmatpush1.msra.mxu0 0.0
    %163 = vmatprep.subr.mxu0 0.0
    %164 = vmatpush1.msra.mxu0 0.0
    %165 = vmatprep.subr.mxu0 0.0
    %166 = vmatpush1.msra.mxu0 0.0
    %167 = vmatprep.subr.mxu0 0.0
    %168 = vmatpush1.msra.mxu0 0.0
    %169 = vmatprep.subr.mxu0 0.0
    %170 = vmatpush1.msra.mxu0 0.0
    %171 = vmatprep.subr.mxu0 0.0
    %172 = vmatpush1.msra.mxu0 0.0
    %173 = vmatprep.subr.mxu0 0.0
    %174 = vmatpush1.msra.mxu0 0.0
    %175 = vmatprep.subr.mxu0 0.0
    %176 = vmatpush1.msra.mxu0 0.0
    %177 = vmatprep.subr.mxu0 0.0
    %178 = vmatpush1.msra.mxu0 0.0
    %179 = vmatprep.subr.mxu0 0.0
    %180 = vmatpush1.msra.mxu0 0.0
    %181 = vmatprep.subr.mxu0 0.0
    %182 = vmatpush1.msra.mxu0 0.0
    %183 = vmatprep.subr.mxu0 0.0
    %184 = vmatpush1.msra.mxu0 0.0
    %185 = vmatprep.subr.mxu0 0.0
    %186 = vmatpush1.msra.mxu0 0.0
    %187 = vmatprep.subr.mxu0 0.0
    %188 = vmatpush1.msra.mxu0 0.0
    %189 = vmatprep.subr.mxu0 0.0
    %190 = vmatpush1.msra.mxu0 0.0
    %191 = vmatprep.subr.mxu0 0.0
    %192 = vmatpush1.msra.mxu0 0.0
    %193 = vmatprep.subr.mxu0 0.0
    %194 = vmatpush1.msra.mxu0 0.0
    %195 = vmatprep.subr.mxu0 0.0
    %196 = vmatpush1.msra.mxu0 0.0
    %197 = vmatprep.subr.mxu0 0.0
    %198 = vmatpush1.msra.mxu0 0.0
    %199 = vmatprep.subr.mxu0 0.0
    %200 = vmatpush1.msra.mxu0 0.0
    %201 = vmatprep.subr.mxu0 0.0
    %202 = vmatpush1.msra.mxu0 0.0
    %203 = vmatprep.subr.mxu0 0.0
    %204 = vmatpush1.msra.mxu0 0.0
    %205 = vmatprep.subr.mxu0 0.0
    %206 = vmatpush1.msra.mxu0 0.0
    %207 = vmatprep.subr.mxu0 0.0
    %208 = vmatpush1.msra.mxu0 0.0
    %209 = vmatprep.subr.mxu0 0.0
    %210 = vmatpush1.msra.mxu0 0.0
    %211 = vmatprep.subr.mxu0 0.0
    %212 = vmatpush1.msra.mxu0 0.0
    %213 = vmatprep.mubr.f32.mxu0 0.0
    %214 = vmatmul.mubr.f32.gmra.mrb[0].mxu0 %v138
    %v215 = vpop.f32.mrb[0].mxu0
    %v216 = vadd.f32 0.0, %v215
    %v217 = vpop.f32.mrb[0].mxu0
    %218 = vmatprep.mubr.f32.mxu0 0.0
    %219 = vmatmul.mubr.f32.gmra.mrb[0].mxu0 %v141
    %v220 = vpop.f32.mrb[0].mxu0
    %v221 = vadd.f32 0.0, %v220
    %v222 = vpop.f32.mrb[0].mxu0
    %223 = vmatprep.mubr.f32.mxu0 0.0
    %224 = vmatmul.mubr.f32.gmra.mrb[0].mxu0 %v144
    %v225 = vpop.f32.mrb[0].mxu0
    %v226 = vadd.f32 0.0, %v225
    %v227 = vpop.f32.mrb[0].mxu0
    %228 = vmatprep.mubr.f32.mxu0 0.0
    %229 = vmatmul.mubr.f32.gmra.mrb[0].mxu0 %v147
    %v230 = vpop.f32.mrb[0].mxu0
    %v231 = vadd.f32 0.0, %v230
    %v232 = vpop.f32.mrb[0].mxu0
    %233 = vdwg.mxu0
    %v234 = vld [vmem:[%s2] sm:$0xff]
    %v235 = vld [vmem:[%s2 + $0x8] sm:$0xff]
    %v236 = vld [vmem:[%s2 + $0x10] sm:$0xff]
    %v237 = vld [vmem:[%s2 + $0x18] sm:$0xff]
    %v238 = vld [vmem:[%s5] sm:$0xff]
    %v239 = vld [vmem:[%s5 + $0x8] sm:$0xff]
    %v241 = vsel %vm49, %v234, 0
    %v244 = vsel %vm49, %v235, 0
    %v247 = vsel %vm49, %v236, 0
    %v250 = vsel %vm49, %v237, 0
    %252 = vmatprep.subr.mxu0 0.0
    %253 = vmatpush1.msra.mxu0 %v238
    %254 = vmatprep.subr.mxu0 0.0
    %255 = vmatpush1.msra.mxu0 %v239
    %256 = vmatprep.subr.mxu0 0.0
    %257 = vmatpush1.msra.mxu0 0.0
    %258 = vmatprep.subr.mxu0 0.0
    %259 = vmatpush1.msra.mxu0 0.0
    %260 = vmatprep.subr.mxu0 0.0
    %261 = vmatpush1.msra.mxu0 0.0
    %262 = vmatprep.subr.mxu0 0.0
    %263 = vmatpush1.msra.mxu0 0.0
    %264 = vmatprep.subr.mxu0 0.0
    %265 = vmatpush1.msra.mxu0 0.0
    %266 = vmatprep.subr.mxu0 0.0
    %267 = vmatpush1.msra.mxu0 0.0
    %268 = vmatprep.subr.mxu0 0.0
    %269 = vmatpush1.msra.mxu0 0.0
    %270 = vmatprep.subr.mxu0 0.0
    %271 = vmatpush1.msra.mxu0 0.0
    %272 = vmatprep.subr.mxu0 0.0
    %273 = vmatpush1.msra.mxu0 0.0
    %274 = vmatprep.subr.mxu0 0.0
    %275 = vmatpush1.msra.mxu0 0.0
    %276 = vmatprep.subr.mxu0 0.0
    %277 = vmatpush1.msra.mxu0 0.0
    %278 = vmatprep.subr.mxu0 0.0
    %279 = vmatpush1.msra.mxu0 0.0
    %280 = vmatprep.subr.mxu0 0.0
    %281 = vmatpush1.msra.mxu0 0.0
    %282 = vmatprep.subr.mxu0 0.0
    %283 = vmatpush1.msra.mxu0 0.0
    %284 = vmatprep.subr.mxu0 0.0
    %285 = vmatpush1.msra.mxu0 0.0
    %286 = vmatprep.subr.mxu0 0.0
    %287 = vmatpush1.msra.mxu0 0.0
    %288 = vmatprep.subr.mxu0 0.0
    %289 = vmatpush1.msra.mxu0 0.0
    %290 = vmatprep.subr.mxu0 0.0
    %291 = vmatpush1.msra.mxu0 0.0
    %292 = vmatprep.subr.mxu0 0.0
    %293 = vmatpush1.msra.mxu0 0.0
    %294 = vmatprep.subr.mxu0 0.0
    %295 = vmatpush1.msra.mxu0 0.0
    %296 = vmatprep.subr.mxu0 0.0
    %297 = vmatpush1.msra.mxu0 0.0
    %298 = vmatprep.subr.mxu0 0.0
    %299 = vmatpush1.msra.mxu0 0.0
    %300 = vmatprep.subr.mxu0 0.0
    %301 = vmatpush1.msra.mxu0 0.0
    %302 = vmatprep.subr.mxu0 0.0
    %303 = vmatpush1.msra.mxu0 0.0
    %304 = vmatprep.subr.mxu0 0.0
    %305 = vmatpush1.msra.mxu0 0.0
    %306 = vmatprep.subr.mxu0 0.0
    %307 = vmatpush1.msra.mxu0 0.0
    %308 = vmatprep.subr.mxu0 0.0
    %309 = vmatpush1.msra.mxu0 0.0
    %310 = vmatprep.subr.mxu0 0.0
    %311 = vmatpush1.msra.mxu0 0.0
    %312 = vmatprep.subr.mxu0 0.0
    %313 = vmatpush1.msra.mxu0 0.0
    %314 = vmatprep.subr.mxu0 0.0
    %315 = vmatpush1.msra.mxu0 0.0
    %316 = vmatprep.mubr.f32.mxu0 0.0
    %317 = vmatmul.mubr.f32.gmra.mrb[0].mxu0 %v241
    %v318 = vpop.f32.mrb[0].mxu0
    %v319 = vadd.f32 0.0, %v318
    %v320 = vpop.f32.mrb[0].mxu0
    %321 = vmatprep.mubr.f32.mxu0 0.0
    %322 = vmatmul.mubr.f32.gmra.mrb[0].mxu0 %v244
    %v323 = vpop.f32.mrb[0].mxu0
    %v324 = vadd.f32 0.0, %v323
    %v325 = vpop.f32.mrb[0].mxu0
    %326 = vmatprep.mubr.f32.mxu0 0.0
    %327 = vmatmul.mubr.f32.gmra.mrb[0].mxu0 %v247
    %v328 = vpop.f32.mrb[0].mxu0
    %v329 = vadd.f32 0.0, %v328
    %v330 = vpop.f32.mrb[0].mxu0
    %331 = vmatprep.mubr.f32.mxu0 0.0
    %332 = vmatmul.mubr.f32.gmra.mrb[0].mxu0 %v250
    %v333 = vpop.f32.mrb[0].mxu0
    %v334 = vadd.f32 0.0, %v333
    %v335 = vpop.f32.mrb[0].mxu0
    %336 = vdwg.mxu0
    %v337 = vld [vmem:[%s7] sm:$0xff]
    %v338 = vld [vmem:[%s7 + $0x8] sm:$0xff]
    %v339 = vld [vmem:[%s7 + $0x10] sm:$0xff]
    %v340 = vld [vmem:[%s7 + $0x18] sm:$0xff]
    %v341 = vld [vmem:[%s7 + $0x20] sm:$0xff]
    %v342 = vld [vmem:[%s7 + $0x28] sm:$0xff]
    %v343 = vld [vmem:[%s7 + $0x30] sm:$0xff]
    %v344 = vld [vmem:[%s7 + $0x38] sm:$0xff]
    %v345 = vld [vmem:[%s8] sm:$0xff]
    %v346 = vld [vmem:[%s8 + $0x8] sm:$0xff]
    %v347 = vld [vmem:[%s8 + $0x10] sm:$0xff]
    %v348 = vld [vmem:[%s8 + $0x18] sm:$0xff]
    %v349 = vld [vmem:[%s8 + $0x20] sm:$0xff]
    %v350 = vld [vmem:[%s8 + $0x28] sm:$0xff]
    %v351 = vld [vmem:[%s8 + $0x30] sm:$0xff]
    %v352 = vld [vmem:[%s8 + $0x38] sm:$0xff]
    %vm353 = vcmask 261120
    %v355 = vsel %vm353, %v337, 0
    %v358 = vsel %vm353, %v338, 0
    %v361 = vsel %vm353, %v339, 0
    %v364 = vsel %vm353, %v340, 0
    %v367 = vsel %vm353, %v341, 0
    %v370 = vsel %vm353, %v342, 0
    %v373 = vsel %vm353, %v343, 0
    %v376 = vsel %vm353, %v344, 0
    %378 = vmatprep.subr.mxu0 0.0
    %379 = vmatpush1.msra.mxu0 %v216
    %380 = vmatprep.subr.mxu0 0.0
    %381 = vmatpush1.msra.mxu0 %v221
    %382 = vmatprep.subr.mxu0 0.0
    %383 = vmatpush1.msra.mxu0 %v226
    %384 = vmatprep.subr.mxu0 0.0
    %385 = vmatpush1.msra.mxu0 %v231
    %386 = vmatprep.subr.mxu0 0.0
    %387 = vmatpush1.msra.mxu0 0.0
    %388 = vmatprep.subr.mxu0 0.0
    %389 = vmatpush1.msra.mxu0 0.0
    %390 = vmatprep.subr.mxu0 0.0
    %391 = vmatpush1.msra.mxu0 0.0
    %392 = vmatprep.subr.mxu0 0.0
    %393 = vmatpush1.msra.mxu0 0.0
    %394 = vmatprep.subr.mxu0 0.0
    %395 = vmatpush1.msra.mxu0 0.0
    %396 = vmatprep.subr.mxu0 0.0
    %397 = vmatpush1.msra.mxu0 0.0
    %398 = vmatprep.subr.mxu0 0.0
    %399 = vmatpush1.msra.mxu0 0.0
    %400 = vmatprep.subr.mxu0 0.0
    %401 = vmatpush1.msra.mxu0 0.0
    %402 = vmatprep.subr.mxu0 0.0
    %403 = vmatpush1.msra.mxu0 0.0
    %404 = vmatprep.subr.mxu0 0.0
    %405 = vmatpush1.msra.mxu0 0.0
    %406 = vmatprep.subr.mxu0 0.0
    %407 = vmatpush1.msra.mxu0 0.0
    %408 = vmatprep.subr.mxu0 0.0
    %409 = vmatpush1.msra.mxu0 0.0
    %410 = vmatprep.subr.mxu0 0.0
    %411 = vmatpush1.msra.mxu0 0.0
    %412 = vmatprep.subr.mxu0 0.0
    %413 = vmatpush1.msra.mxu0 0.0
    %414 = vmatprep.subr.mxu0 0.0
    %415 = vmatpush1.msra.mxu0 0.0
    %416 = vmatprep.subr.mxu0 0.0
    %417 = vmatpush1.msra.mxu0 0.0
    %418 = vmatprep.subr.mxu0 0.0
    %419 = vmatpush1.msra.mxu0 0.0
    %420 = vmatprep.subr.mxu0 0.0
    %421 = vmatpush1.msra.mxu0 0.0
    %422 = vmatprep.subr.mxu0 0.0
    %423 = vmatpush1.msra.mxu0 0.0
    %424 = vmatprep.subr.mxu0 0.0
    %425 = vmatpush1.msra.mxu0 0.0
    %426 = vmatprep.subr.mxu0 0.0
    %427 = vmatpush1.msra.mxu0 0.0
    %428 = vmatprep.subr.mxu0 0.0
    %429 = vmatpush1.msra.mxu0 0.0
    %430 = vmatprep.subr.mxu0 0.0
    %431 = vmatpush1.msra.mxu0 0.0
    %432 = vmatprep.subr.mxu0 0.0
    %433 = vmatpush1.msra.mxu0 0.0
    %434 = vmatprep.subr.mxu0 0.0
    %435 = vmatpush1.msra.mxu0 0.0
    %436 = vmatprep.subr.mxu0 0.0
    %437 = vmatpush1.msra.mxu0 0.0
    %438 = vmatprep.subr.mxu0 0.0
    %439 = vmatpush1.msra.mxu0 0.0
    %440 = vmatprep.subr.mxu0 0.0
    %441 = vmatpush1.msra.mxu0 0.0
    %442 = vmatprep.mubr.f32.mxu0 0.0
    %443 = vmatmul.mubr.f32.gmra.mrb[0].mxu0 %v355
    %v444 = vpop.f32.mrb[0].mxu0
    %v445 = vadd.f32 %v345, %v444
    %v446 = vpop.f32.mrb[0].mxu0
    %447 = vmatprep.mubr.f32.mxu0 0.0
    %448 = vmatmul.mubr.f32.gmra.mrb[0].mxu0 %v358
    %v449 = vpop.f32.mrb[0].mxu0
    %v450 = vadd.f32 %v346, %v449
    %v451 = vpop.f32.mrb[0].mxu0
    %452 = vmatprep.mubr.f32.mxu0 0.0
    %453 = vmatmul.mubr.f32.gmra.mrb[0].mxu0 %v361
    %v454 = vpop.f32.mrb[0].mxu0
    %v455 = vadd.f32 %v347, %v454
    %v456 = vpop.f32.mrb[0].mxu0
    %457 = vmatprep.mubr.f32.mxu0 0.0
    %458 = vmatmul.mubr.f32.gmra.mrb[0].mxu0 %v364
    %v459 = vpop.f32.mrb[0].mxu0
    %v460 = vadd.f32 %v348, %v459
    %v461 = vpop.f32.mrb[0].mxu0
    %462 = vmatprep.mubr.f32.mxu0 0.0
    %463 = vmatmul.mubr.f32.gmra.mrb[0].mxu0 %v367
    %v464 = vpop.f32.mrb[0].mxu0
    %v465 = vadd.f32 %v349, %v464
    %v466 = vpop.f32.mrb[0].mxu0
    %467 = vmatprep.mubr.f32.mxu0 0.0
    %468 = vmatmul.mubr.f32.gmra.mrb[0].mxu0 %v370
    %v469 = vpop.f32.mrb[0].mxu0
    %v470 = vadd.f32 %v350, %v469
    %v471 = vpop.f32.mrb[0].mxu0
    %472 = vmatprep.mubr.f32.mxu0 0.0
    %473 = vmatmul.mubr.f32.gmra.mrb[0].mxu0 %v373
    %v474 = vpop.f32.mrb[0].mxu0
    %v475 = vadd.f32 %v351, %v474
    %v476 = vpop.f32.mrb[0].mxu0
    %477 = vmatprep.mubr.f32.mxu0 0.0
    %478 = vmatmul.mubr.f32.gmra.mrb[0].mxu0 %v376
    %v479 = vpop.f32.mrb[0].mxu0
    %v480 = vadd.f32 %v352, %v479
    %v481 = vpop.f32.mrb[0].mxu0
    %482 = vdwg.mxu0
    %v483 = vld [vmem:[%s9] sm:$0xff]
    %v484 = vld [vmem:[%s9 + $0x8] sm:$0xff]
    %v485 = vld [vmem:[%s9 + $0x10] sm:$0xff]
    %v486 = vld [vmem:[%s9 + $0x18] sm:$0xff]
    %v487 = vld [vmem:[%s9 + $0x20] sm:$0xff]
    %v488 = vld [vmem:[%s9 + $0x28] sm:$0xff]
    %v489 = vld [vmem:[%s9 + $0x30] sm:$0xff]
    %v490 = vld [vmem:[%s9 + $0x38] sm:$0xff]
    %491 = vmatprep.subr.mxu0 0.0
    %492 = vmatpush1.msra.mxu0 %v319
    %493 = vmatprep.subr.mxu0 0.0
    %494 = vmatpush1.msra.mxu0 %v324
    %495 = vmatprep.subr.mxu0 0.0
    %496 = vmatpush1.msra.mxu0 %v329
    %497 = vmatprep.subr.mxu0 0.0
    %498 = vmatpush1.msra.mxu0 %v334
    %499 = vmatprep.subr.mxu0 0.0
    %500 = vmatpush1.msra.mxu0 0.0
    %501 = vmatprep.subr.mxu0 0.0
    %502 = vmatpush1.msra.mxu0 0.0
    %503 = vmatprep.subr.mxu0 0.0
    %504 = vmatpush1.msra.mxu0 0.0
    %505 = vmatprep.subr.mxu0 0.0
    %506 = vmatpush1.msra.mxu0 0.0
    %507 = vmatprep.subr.mxu0 0.0
    %508 = vmatpush1.msra.mxu0 0.0
    %509 = vmatprep.subr.mxu0 0.0
    %510 = vmatpush1.msra.mxu0 0.0
    %511 = vmatprep.subr.mxu0 0.0
    %512 = vmatpush1.msra.mxu0 0.0
    %513 = vmatprep.subr.mxu0 0.0
    %514 = vmatpush1.msra.mxu0 0.0
    %515 = vmatprep.subr.mxu0 0.0
    %516 = vmatpush1.msra.mxu0 0.0
    %517 = vmatprep.subr.mxu0 0.0
    %518 = vmatpush1.msra.mxu0 0.0
    %519 = vmatprep.subr.mxu0 0.0
    %520 = vmatpush1.msra.mxu0 0.0
    %521 = vmatprep.subr.mxu0 0.0
    %522 = vmatpush1.msra.mxu0 0.0
    %523 = vmatprep.subr.mxu0 0.0
    %524 = vmatpush1.msra.mxu0 0.0
    %525 = vmatprep.subr.mxu0 0.0
    %526 = vmatpush1.msra.mxu0 0.0
    %527 = vmatprep.subr.mxu0 0.0
    %528 = vmatpush1.msra.mxu0 0.0
    %529 = vmatprep.subr.mxu0 0.0
    %530 = vmatpush1.msra.mxu0 0.0
    %531 = vmatprep.subr.mxu0 0.0
    %532 = vmatpush1.msra.mxu0 0.0
    %533 = vmatprep.subr.mxu0 0.0
    %534 = vmatpush1.msra.mxu0 0.0
    %535 = vmatprep.subr.mxu0 0.0
    %536 = vmatpush1.msra.mxu0 0.0
    %537 = vmatprep.subr.mxu0 0.0
    %538 = vmatpush1.msra.mxu0 0.0
    %539 = vmatprep.subr.mxu0 0.0
    %540 = vmatpush1.msra.mxu0 0.0
    %541 = vmatprep.subr.mxu0 0.0
    %542 = vmatpush1.msra.mxu0 0.0
    %543 = vmatprep.subr.mxu0 0.0
    %544 = vmatpush1.msra.mxu0 0.0
    %545 = vmatprep.subr.mxu0 0.0
    %546 = vmatpush1.msra.mxu0 0.0
    %547 = vmatprep.subr.mxu0 0.0
    %548 = vmatpush1.msra.mxu0 0.0
    %549 = vmatprep.subr.mxu0 0.0
    %550 = vmatpush1.msra.mxu0 0.0
    %551 = vmatprep.subr.mxu0 0.0
    %552 = vmatpush1.msra.mxu0 0.0
    %553 = vmatprep.subr.mxu0 0.0
    %554 = vmatpush1.msra.mxu0 0.0
    %555 = vmatprep.mubr.f32.mxu0 0.0
    %556 = vmatmul.mubr.f32.gmra.mrb[0].mxu0 %v355
    %v557 = vpop.f32.mrb[0].mxu0
    %v558 = vadd.f32 %v483, %v557
    %v559 = vpop.f32.mrb[0].mxu0
    %560 = vmatprep.mubr.f32.mxu0 0.0
    %561 = vmatmul.mubr.f32.gmra.mrb[0].mxu0 %v358
    %v562 = vpop.f32.mrb[0].mxu0
    %v563 = vadd.f32 %v484, %v562
    %v564 = vpop.f32.mrb[0].mxu0
    %565 = vmatprep.mubr.f32.mxu0 0.0
    %566 = vmatmul.mubr.f32.gmra.mrb[0].mxu0 %v361
    %v567 = vpop.f32.mrb[0].mxu0
    %v568 = vadd.f32 %v485, %v567
    %v569 = vpop.f32.mrb[0].mxu0
    %570 = vmatprep.mubr.f32.mxu0 0.0
    %571 = vmatmul.mubr.f32.gmra.mrb[0].mxu0 %v364
    %v572 = vpop.f32.mrb[0].mxu0
    %v573 = vadd.f32 %v486, %v572
    %v574 = vpop.f32.mrb[0].mxu0
    %575 = vmatprep.mubr.f32.mxu0 0.0
    %576 = vmatmul.mubr.f32.gmra.mrb[0].mxu0 %v367
    %v577 = vpop.f32.mrb[0].mxu0
    %v578 = vadd.f32 %v487, %v577
    %v579 = vpop.f32.mrb[0].mxu0
    %580 = vmatprep.mubr.f32.mxu0 0.0
    %581 = vmatmul.mubr.f32.gmra.mrb[0].mxu0 %v370
    %v582 = vpop.f32.mrb[0].mxu0
    %v583 = vadd.f32 %v488, %v582
    %v584 = vpop.f32.mrb[0].mxu0
    %585 = vmatprep.mubr.f32.mxu0 0.0
    %586 = vmatmul.mubr.f32.gmra.mrb[0].mxu0 %v373
    %v587 = vpop.f32.mrb[0].mxu0
    %v588 = vadd.f32 %v489, %v587
    %v589 = vpop.f32.mrb[0].mxu0
    %590 = vmatprep.mubr.f32.mxu0 0.0
    %591 = vmatmul.mubr.f32.gmra.mrb[0].mxu0 %v376
    %v592 = vpop.f32.mrb[0].mxu0
    %v593 = vadd.f32 %v490, %v592
    %v594 = vpop.f32.mrb[0].mxu0
    %595 = vdwg.mxu0
    %v596 = vmul.f32 %v445, %v123
    %v597 = vmul.f32 %v450, %v123
    %v598 = vmul.f32 %v455, %v123
    %v599 = vmul.f32 %v460, %v123
    %v600 = vmul.f32 %v465, %v128
    %v601 = vmul.f32 %v470, %v128
    %v602 = vmul.f32 %v475, %v128
    %v603 = vmul.f32 %v480, %v128
    %v604 = vld [vmem:[%s11] sm:$0xff]
    %v605 = vld [vmem:[%s11 + $0x8] sm:$0xff]
    %v606 = vld [vmem:[%s10] sm:$0xff]
    %v607 = vld [vmem:[%s10 + $0x8] sm:$0xff]
    %v608 = vld [vmem:[%s10 + $0x10] sm:$0xff]
    %v609 = vld [vmem:[%s10 + $0x18] sm:$0xff]
    %v610 = vld [vmem:[%s10 + $0x20] sm:$0xff]
    %v611 = vld [vmem:[%s10 + $0x28] sm:$0xff]
    %v612 = vld [vmem:[%s10 + $0x30] sm:$0xff]
    %v613 = vld [vmem:[%s10 + $0x38] sm:$0xff]
    %v615 = vsel %vm49, %v596, 0
    %v618 = vsel %vm49, %v597, 0
    %v621 = vsel %vm49, %v598, 0
    %v624 = vsel %vm49, %v599, 0
    %v627 = vsel %vm49, %v600, 0
    %v630 = vsel %vm49, %v601, 0
    %v633 = vsel %vm49, %v602, 0
    %v636 = vsel %vm49, %v603, 0
    %638 = vmatprep.subr.mxu0 0.0
    %639 = vmatpush1.msra.mxu0 %v604
    %640 = vmatprep.subr.mxu0 0.0
    %641 = vmatpush1.msra.mxu0 %v605
    %642 = vmatprep.subr.mxu0 0.0
    %643 = vmatpush1.msra.mxu0 0.0
    %644 = vmatprep.subr.mxu0 0.0
    %645 = vmatpush1.msra.mxu0 0.0
    %646 = vmatprep.subr.mxu0 0.0
    %647 = vmatpush1.msra.mxu0 0.0
    %648 = vmatprep.subr.mxu0 0.0
    %649 = vmatpush1.msra.mxu0 0.0
    %650 = vmatprep.subr.mxu0 0.0
    %651 = vmatpush1.msra.mxu0 0.0
    %652 = vmatprep.subr.mxu0 0.0
    %653 = vmatpush1.msra.mxu0 0.0
    %654 = vmatprep.subr.mxu0 0.0
    %655 = vmatpush1.msra.mxu0 0.0
    %656 = vmatprep.subr.mxu0 0.0
    %657 = vmatpush1.msra.mxu0 0.0
    %658 = vmatprep.subr.mxu0 0.0
    %659 = vmatpush1.msra.mxu0 0.0
    %660 = vmatprep.subr.mxu0 0.0
    %661 = vmatpush1.msra.mxu0 0.0
    %662 = vmatprep.subr.mxu0 0.0
    %663 = vmatpush1.msra.mxu0 0.0
    %664 = vmatprep.subr.mxu0 0.0
    %665 = vmatpush1.msra.mxu0 0.0
    %666 = vmatprep.subr.mxu0 0.0
    %667 = vmatpush1.msra.mxu0 0.0
    %668 = vmatprep.subr.mxu0 0.0
    %669 = vmatpush1.msra.mxu0 0.0
    %670 = vmatprep.subr.mxu0 0.0
    %671 = vmatpush1.msra.mxu0 0.0
    %672 = vmatprep.subr.mxu0 0.0
    %673 = vmatpush1.msra.mxu0 0.0
    %674 = vmatprep.subr.mxu0 0.0
    %675 = vmatpush1.msra.mxu0 0.0
    %676 = vmatprep.subr.mxu0 0.0
    %677 = vmatpush1.msra.mxu0 0.0
    %678 = vmatprep.subr.mxu0 0.0
    %679 = vmatpush1.msra.mxu0 0.0
    %680 = vmatprep.subr.mxu0 0.0
    %681 = vmatpush1.msra.mxu0 0.0
    %682 = vmatprep.subr.mxu0 0.0
    %683 = vmatpush1.msra.mxu0 0.0
    %684 = vmatprep.subr.mxu0 0.0
    %685 = vmatpush1.msra.mxu0 0.0
    %686 = vmatprep.subr.mxu0 0.0
    %687 = vmatpush1.msra.mxu0 0.0
    %688 = vmatprep.subr.mxu0 0.0
    %689 = vmatpush1.msra.mxu0 0.0
    %690 = vmatprep.subr.mxu0 0.0
    %691 = vmatpush1.msra.mxu0 0.0
    %692 = vmatprep.subr.mxu0 0.0
    %693 = vmatpush1.msra.mxu0 0.0
    %694 = vmatprep.subr.mxu0 0.0
    %695 = vmatpush1.msra.mxu0 0.0
    %696 = vmatprep.subr.mxu0 0.0
    %697 = vmatpush1.msra.mxu0 0.0
    %698 = vmatprep.subr.mxu0 0.0
    %699 = vmatpush1.msra.mxu0 0.0
    %700 = vmatprep.subr.mxu0 0.0
    %701 = vmatpush1.msra.mxu0 0.0
    %702 = vmatprep.mubr.f32.mxu0 0.0
    %703 = vmatmul.mubr.f32.gmra.mrb[0].mxu0 %v615
    %v704 = vpop.f32.mrb[0].mxu0
    %v705 = vadd.f32 %v606, %v704
    %v706 = vpop.f32.mrb[0].mxu0
    %707 = vmatprep.mubr.f32.mxu0 0.0
    %708 = vmatmul.mubr.f32.gmra.mrb[0].mxu0 %v618
    %v709 = vpop.f32.mrb[0].mxu0
    %v710 = vadd.f32 %v607, %v709
    %v711 = vpop.f32.mrb[0].mxu0
    %712 = vmatprep.mubr.f32.mxu0 0.0
    %713 = vmatmul.mubr.f32.gmra.mrb[0].mxu0 %v621
    %v714 = vpop.f32.mrb[0].mxu0
    %v715 = vadd.f32 %v608, %v714
    %v716 = vpop.f32.mrb[0].mxu0
    %717 = vmatprep.mubr.f32.mxu0 0.0
    %718 = vmatmul.mubr.f32.gmra.mrb[0].mxu0 %v624
    %v719 = vpop.f32.mrb[0].mxu0
    %v720 = vadd.f32 %v609, %v719
    %v721 = vpop.f32.mrb[0].mxu0
    %722 = vmatprep.mubr.f32.mxu0 0.0
    %723 = vmatmul.mubr.f32.gmra.mrb[0].mxu0 %v627
    %v724 = vpop.f32.mrb[0].mxu0
    %v725 = vadd.f32 %v610, %v724
    %v726 = vpop.f32.mrb[0].mxu0
    %727 = vmatprep.mubr.f32.mxu0 0.0
    %728 = vmatmul.mubr.f32.gmra.mrb[0].mxu0 %v630
    %v729 = vpop.f32.mrb[0].mxu0
    %v730 = vadd.f32 %v611, %v729
    %v731 = vpop.f32.mrb[0].mxu0
    %732 = vmatprep.mubr.f32.mxu0 0.0
    %733 = vmatmul.mubr.f32.gmra.mrb[0].mxu0 %v633
    %v734 = vpop.f32.mrb[0].mxu0
    %v735 = vadd.f32 %v612, %v734
    %v736 = vpop.f32.mrb[0].mxu0
    %737 = vmatprep.mubr.f32.mxu0 0.0
    %738 = vmatmul.mubr.f32.gmra.mrb[0].mxu0 %v636
    %v739 = vpop.f32.mrb[0].mxu0
    %v740 = vadd.f32 %v613, %v739
    %v741 = vpop.f32.mrb[0].mxu0
    %742 = vdwg.mxu0
    %vm743 = vcmask 15360
    %v744 = vsel %vm743, %v705, -inf
    %v745 = vsel %vm743, %v710, -inf
    %v746 = vsel %vm743, %v715, -inf
    %v747 = vmax.f32 %v744, %v746
    %v748 = vsel %vm743, %v720, -inf
    %v749 = vmax.f32 %v745, %v748
    %v750 = vmax.f32 %v747, %v749
    %v751 = vsel %vm743, %v725, -inf
    %v752 = vsel %vm743, %v730, -inf
    %v753 = vsel %vm743, %v735, -inf
    %v754 = vmax.f32 %v751, %v753
    %v755 = vsel %vm743, %v740, -inf
    %v756 = vmax.f32 %v752, %v755
    %v757 = vmax.f32 %v754, %v756
    %v758 = vsub.f32 %v705, %v750
    %v759 = vsub.f32 %v710, %v750
    %v760 = vsub.f32 %v715, %v750
    %v761 = vsub.f32 %v720, %v750
    %v762 = vsub.f32 %v725, %v757
    %v763 = vsub.f32 %v730, %v757
    %v764 = vsub.f32 %v735, %v757
    %v765 = vsub.f32 %v740, %v757
    %v766 = vmul.f32 %v758, 1.442695
    %v767 = vpow.pop %v766
    %v768 = vmul.f32 %v759, 1.442695
    %v769 = vpow.pop %v768
    %v770 = vmul.f32 %v760, 1.442695
    %v771 = vpow.pop %v770
    %v772 = vmul.f32 %v761, 1.442695
    %v773 = vpow.pop %v772
    %v774 = vmul.f32 %v762, 1.442695
    %v775 = vpow.pop %v774
    %v776 = vmul.f32 %v763, 1.442695
    %v777 = vpow.pop %v776
    %v778 = vmul.f32 %v764, 1.442695
    %v779 = vpow.pop %v778
    %v780 = vmul.f32 %v765, 1.442695
    %v781 = vpow.pop %v780
    %v782 = vsel %vm743, %v767, 0.0
    %v783 = vsel %vm743, %v769, 0.0
    %v784 = vadd.f32 %v782, %v783
    %v785 = vsel %vm743, %v771, 0.0
    %v786 = vadd.f32 %v784, %v785
    %v787 = vsel %vm743, %v773, 0.0
    %v788 = vadd.f32 %v786, %v787
    %v789 = vsel %vm743, %v775, 0.0
    %v790 = vsel %vm743, %v777, 0.0
    %v791 = vadd.f32 %v789, %v790
    %v792 = vsel %vm743, %v779, 0.0
    %v793 = vadd.f32 %v791, %v792
    %v794 = vsel %vm743, %v781, 0.0
    %v795 = vadd.f32 %v793, %v794
    %v796 = vrcp.pop %v788
    %v797 = vmul.f32 %v767, %v796
    %v798 = vmul.f32 %v769, %v796
    %v799 = vmul.f32 %v771, %v796
    %v800 = vmul.f32 %v773, %v796
    %v801 = vrcp.pop %v795
    %v802 = vmul.f32 %v775, %v801
    %v803 = vmul.f32 %v777, %v801
    %v804 = vmul.f32 %v779, %v801
    %v805 = vmul.f32 %v781, %v801
    %v806 = vld [vmem:[%s12] sm:$0x3]
    %v808 = vsel %vm743, %v797, 0
    %v811 = vsel %vm743, %v798, 0
    %v814 = vsel %vm743, %v799, 0
    %v817 = vsel %vm743, %v800, 0
    %v820 = vsel %vm743, %v802, 0
    %v823 = vsel %vm743, %v803, 0
    %v826 = vsel %vm743, %v804, 0
    %v829 = vsel %vm743, %v805, 0
    %vm831 = vcmask 1041408
    %v833 = vsel %vm831, %v806, 0
    %835 = vmatprep.subr.mxu0 0.0
    %836 = vmatpush1.msra.mxu0 %v833
    %837 = vmatprep.subr.mxu0 0.0
    %838 = vmatpush1.msra.mxu0 0.0
    %839 = vmatprep.subr.mxu0 0.0
    %840 = vmatpush1.msra.mxu0 0.0
    %841 = vmatprep.subr.mxu0 0.0
    %842 = vmatpush1.msra.mxu0 0.0
    %843 = vmatprep.subr.mxu0 0.0
    %844 = vmatpush1.msra.mxu0 0.0
    %845 = vmatprep.subr.mxu0 0.0
    %846 = vmatpush1.msra.mxu0 0.0
    %847 = vmatprep.subr.mxu0 0.0
    %848 = vmatpush1.msra.mxu0 0.0
    %849 = vmatprep.subr.mxu0 0.0
    %850 = vmatpush1.msra.mxu0 0.0
    %851 = vmatprep.subr.mxu0 0.0
    %852 = vmatpush1.msra.mxu0 0.0
    %853 = vmatprep.subr.mxu0 0.0
    %854 = vmatpush1.msra.mxu0 0.0
    %855 = vmatprep.subr.mxu0 0.0
    %856 = vmatpush1.msra.mxu0 0.0
    %857 = vmatprep.subr.mxu0 0.0
    %858 = vmatpush1.msra.mxu0 0.0
    %859 = vmatprep.subr.mxu0 0.0
    %860 = vmatpush1.msra.mxu0 0.0
    %861 = vmatprep.subr.mxu0 0.0
    %862 = vmatpush1.msra.mxu0 0.0
    %863 = vmatprep.subr.mxu0 0.0
    %864 = vmatpush1.msra.mxu0 0.0
    %865 = vmatprep.subr.mxu0 0.0
    %866 = vmatpush1.msra.mxu0 0.0
    %867 = vmatprep.subr.mxu0 0.0
    %868 = vmatpush1.msra.mxu0 0.0
    %869 = vmatprep.subr.mxu0 0.0
    %870 = vmatpush1.msra.mxu0 0.0
    %871 = vmatprep.subr.mxu0 0.0
    %872 = vmatpush1.msra.mxu0 0.0
    %873 = vmatprep.subr.mxu0 0.0
    %874 = vmatpush1.msra.mxu0 0.0
    %875 = vmatprep.subr.mxu0 0.0
    %876 = vmatpush1.msra.mxu0 0.0
    %877 = vmatprep.subr.mxu0 0.0
    %878 = vmatpush1.msra.mxu0 0.0
    %879 = vmatprep.subr.mxu0 0.0
    %880 = vmatpush1.msra.mxu0 0.0
    %881 = vmatprep.subr.mxu0 0.0
    %882 = vmatpush1.msra.mxu0 0.0
    %883 = vmatprep.subr.mxu0 0.0
    %884 = vmatpush1.msra.mxu0 0.0
    %885 = vmatprep.subr.mxu0 0.0
    %886 = vmatpush1.msra.mxu0 0.0
    %887 = vmatprep.subr.mxu0 0.0
    %888 = vmatpush1.msra.mxu0 0.0
    %889 = vmatprep.subr.mxu0 0.0
    %890 = vmatpush1.msra.mxu0 0.0
    %891 = vmatprep.subr.mxu0 0.0
    %892 = vmatpush1.msra.mxu0 0.0
    %893 = vmatprep.subr.mxu0 0.0
    %894 = vmatpush1.msra.mxu0 0.0
    %895 = vmatprep.subr.mxu0 0.0
    %896 = vmatpush1.msra.mxu0 0.0
    %897 = vmatprep.subr.mxu0 0.0
    %898 = vmatpush1.msra.mxu0 0.0
    %899 = vmatprep.mubr.f32.mxu0 0.0
    %900 = vmatmul.mubr.f32.gmra.mrb[0].mxu0 %v808
    %v901 = vpop.f32.mrb[0].mxu0
    %v902 = vadd.f32 0.0, %v901
    %v903 = vpop.f32.mrb[0].mxu0
    %904 = vmatprep.mubr.f32.mxu0 0.0
    %905 = vmatmul.mubr.f32.gmra.mrb[0].mxu0 %v811
    %v906 = vpop.f32.mrb[0].mxu0
    %v907 = vadd.f32 0.0, %v906
    %v908 = vpop.f32.mrb[0].mxu0
    %909 = vmatprep.mubr.f32.mxu0 0.0
    %910 = vmatmul.mubr.f32.gmra.mrb[0].mxu0 %v814
    %v911 = vpop.f32.mrb[0].mxu0
    %v912 = vadd.f32 0.0, %v911
    %v913 = vpop.f32.mrb[0].mxu0
    %914 = vmatprep.mubr.f32.mxu0 0.0
    %915 = vmatmul.mubr.f32.gmra.mrb[0].mxu0 %v817
    %v916 = vpop.f32.mrb[0].mxu0
    %v917 = vadd.f32 0.0, %v916
    %v918 = vpop.f32.mrb[0].mxu0
    %919 = vmatprep.mubr.f32.mxu0 0.0
    %920 = vmatmul.mubr.f32.gmra.mrb[0].mxu0 %v820
    %v921 = vpop.f32.mrb[0].mxu0
    %v922 = vadd.f32 0.0, %v921
    %v923 = vpop.f32.mrb[0].mxu0
    %924 = vmatprep.mubr.f32.mxu0 0.0
    %925 = vmatmul.mubr.f32.gmra.mrb[0].mxu0 %v823
    %v926 = vpop.f32.mrb[0].mxu0
    %v927 = vadd.f32 0.0, %v926
    %v928 = vpop.f32.mrb[0].mxu0
    %929 = vmatprep.mubr.f32.mxu0 0.0
    %930 = vmatmul.mubr.f32.gmra.mrb[0].mxu0 %v826
    %v931 = vpop.f32.mrb[0].mxu0
    %v932 = vadd.f32 0.0, %v931
    %v933 = vpop.f32.mrb[0].mxu0
    %934 = vmatprep.mubr.f32.mxu0 0.0
    %935 = vmatmul.mubr.f32.gmra.mrb[0].mxu0 %v829
    %v936 = vpop.f32.mrb[0].mxu0
    %v937 = vadd.f32 0.0, %v936
    %v938 = vpop.f32.mrb[0].mxu0
    %939 = vdwg.mxu0
    %v940 = vmul.f32 %v902, %v558
    %v941 = vmul.f32 %v907, %v563
    %v942 = vmul.f32 %v912, %v568
    %v943 = vmul.f32 %v917, %v573
    %v944 = vmul.f32 %v922, %v578
    %v945 = vmul.f32 %v927, %v583
    %v946 = vmul.f32 %v932, %v588
    %v947 = vmul.f32 %v937, %v593
    %v948 = vsel %vm49, %v940, 0.0
    %v949 = vsel %vm49, %v941, 0.0
    %v950 = vadd.f32 %v948, %v949
    %v951 = vsel %vm49, %v942, 0.0
    %v952 = vadd.f32 %v950, %v951
    %v953 = vsel %vm49, %v943, 0.0
    %v954 = vadd.f32 %v952, %v953
    %v955 = vsel %vm49, %v944, 0.0
    %v956 = vsel %vm49, %v945, 0.0
    %v957 = vadd.f32 %v955, %v956
    %v958 = vsel %vm49, %v946, 0.0
    %v959 = vadd.f32 %v957, %v958
    %v960 = vsel %vm49, %v947, 0.0
    %v961 = vadd.f32 %v959, %v960
    %v962 = vld [vmem:[%s6] sm:$0xff]
    %v963 = vld [vmem:[%s6 + $0x8] sm:$0xff]
    %v965 = vsel %vm49, %v954, 0
    %v968 = vsel %vm49, %v961, 0
    %970 = vmatprep.subr.mxu0 0.0
    %971 = vmatpush1.msra.mxu0 %v962
    %972 = vmatprep.subr.mxu0 0.0
    %973 = vmatpush1.msra.mxu0 %v963
    %974 = vmatprep.subr.mxu0 0.0
    %975 = vmatpush1.msra.mxu0 0.0
    %976 = vmatprep.subr.mxu0 0.0
    %977 = vmatpush1.msra.mxu0 0.0
    %978 = vmatprep.subr.mxu0 0.0
    %979 = vmatpush1.msra.mxu0 0.0
    %980 = vmatprep.subr.mxu0 0.0
    %981 = vmatpush1.msra.mxu0 0.0
    %982 = vmatprep.subr.mxu0 0.0
    %983 = vmatpush1.msra.mxu0 0.0
    %984 = vmatprep.subr.mxu0 0.0
    %985 = vmatpush1.msra.mxu0 0.0
    %986 = vmatprep.subr.mxu0 0.0
    %987 = vmatpush1.msra.mxu0 0.0
    %988 = vmatprep.subr.mxu0 0.0
    %989 = vmatpush1.msra.mxu0 0.0
    %990 = vmatprep.subr.mxu0 0.0
    %991 = vmatpush1.msra.mxu0 0.0
    %992 = vmatprep.subr.mxu0 0.0
    %993 = vmatpush1.msra.mxu0 0.0
    %994 = vmatprep.subr.mxu0 0.0
    %995 = vmatpush1.msra.mxu0 0.0
    %996 = vmatprep.subr.mxu0 0.0
    %997 = vmatpush1.msra.mxu0 0.0
    %998 = vmatprep.subr.mxu0 0.0
    %999 = vmatpush1.msra.mxu0 0.0
    %1000 = vmatprep.subr.mxu0 0.0
    %1001 = vmatpush1.msra.mxu0 0.0
    %1002 = vmatprep.subr.mxu0 0.0
    %1003 = vmatpush1.msra.mxu0 0.0
    %1004 = vmatprep.subr.mxu0 0.0
    %1005 = vmatpush1.msra.mxu0 0.0
    %1006 = vmatprep.subr.mxu0 0.0
    %1007 = vmatpush1.msra.mxu0 0.0
    %1008 = vmatprep.subr.mxu0 0.0
    %1009 = vmatpush1.msra.mxu0 0.0
    %1010 = vmatprep.subr.mxu0 0.0
    %1011 = vmatpush1.msra.mxu0 0.0
    %1012 = vmatprep.subr.mxu0 0.0
    %1013 = vmatpush1.msra.mxu0 0.0
    %1014 = vmatprep.subr.mxu0 0.0
    %1015 = vmatpush1.msra.mxu0 0.0
    %1016 = vmatprep.subr.mxu0 0.0
    %1017 = vmatpush1.msra.mxu0 0.0
    %1018 = vmatprep.subr.mxu0 0.0
    %1019 = vmatpush1.msra.mxu0 0.0
    %1020 = vmatprep.subr.mxu0 0.0
    %1021 = vmatpush1.msra.mxu0 0.0
    %1022 = vmatprep.subr.mxu0 0.0
    %1023 = vmatpush1.msra.mxu0 0.0
    %1024 = vmatprep.subr.mxu0 0.0
    %1025 = vmatpush1.msra.mxu0 0.0
    %1026 = vmatprep.subr.mxu0 0.0
    %1027 = vmatpush1.msra.mxu0 0.0
    %1028 = vmatprep.subr.mxu0 0.0
    %1029 = vmatpush1.msra.mxu0 0.0
    %1030 = vmatprep.subr.mxu0 0.0
    %1031 = vmatpush1.msra.mxu0 0.0
    %1032 = vmatprep.subr.mxu0 0.0
    %1033 = vmatpush1.msra.mxu0 0.0
    %1034 = vmatprep.mubr.f32.mxu0 0.0
    %1035 = vmatmul.mubr.f32.gmra.mrb[0].mxu0 %v965
    %v1036 = vpop.f32.mrb[0].mxu0
    %v1037 = vadd.f32 0.0, %v1036
    %v1038 = vpop.f32.mrb[0].mxu0
    %1039 = vmatprep.mubr.f32.mxu0 0.0
    %1040 = vmatmul.mubr.f32.gmra.mrb[0].mxu0 %v968
    %v1041 = vpop.f32.mrb[0].mxu0
    %v1042 = vadd.f32 0.0, %v1041
    %v1043 = vpop.f32.mrb[0].mxu0
    %1044 = vdwg.mxu0
    %1045 = vst.msk [vmem:[#allocation2] sm:$0xff] %vm49, %v1037
    %1046 = vst.msk [vmem:[#allocation2 + $0x8] sm:$0xff] %vm49, %v1042
    // Predicated region
    $region54: #{sparse_mha_encoder_forward.1} parent=1 // pred_check
      _
    $region55: #{sparse_mha_encoder_forward.1} parent=1 // pred_check_branch
      %1048 = sbr.rel (0) target = $region57
    $region56: #{sparse_mha_encoder_forward.1} parent=1 // pred_region
      %s1050 = ssub.s32 256, 256
      %1051 = vsyncadd [#allocation3], %s1050
      %s1052 = sshll.u32 [#allocation2], 4
      %s1053 = int_to_ptr.vmem [resolvable:$true] %s1052
      %1058 = dma.vmem_to_hbm [thread:$0]  %s1053, 256, %s13, [#allocation3], 128, 128, 8
    $region57: #{sparse_mha_encoder_forward.1} parent=1 // pred_fallthru
      _
    // Predicated region
    $region58: #{sparse_mha_encoder_forward.1} parent=1 // pred_check
      _
    $region59: #{sparse_mha_encoder_forward.1} parent=1 // pred_check_branch
      %1060 = sbr.rel (0) target = $region61
    $region60: #{sparse_mha_encoder_forward.1} parent=1 // pred_region
      %1061 = dma.done [#allocation3], 256
    $region61: #{sparse_mha_encoder_forward.1} parent=1 // pred_fallthru
      _
    %1062 = vsyncpa [#allocation3], 1

</llo_original>
